<compile_context>
chip_gen: v7x
topology: tpu7x:2x2x1
jax: 0.10.0
libtpu: 0.0.40
codegen_flags: <defaults>
</compile_context>

<pallas_src>
import jax
import jax.numpy as jnp
import numpy as np
from jax import lax
from jax.experimental import pallas as pl
from jax.experimental.pallas import tpu as pltpu


def _round_up(x, m):
    return (x + m - 1) // m * m


def _pad_feature_dim(d):
    # <=128 -> 128 lanes; >128 -> multiple of 256 (full MXU contraction width
    # on v6e/v7x; on v5e 128 is already full width).
    d = max(int(d), 1)
    return 128 if d <= 128 else _round_up(d, 256)


def _vmem_capacity_bytes():
    try:
        info = pltpu.get_tpu_info()
        cap = getattr(info, "vmem_capacity_bytes", None)
        if cap:
            return int(cap)
    except Exception:
        pass
    return 64 * 1024 * 1024  # conservative (v7x per-TC VMEM)


def _agnn_step(nh_dst, nh_src, x_src, adj_tile, beta,
               w_ref, out_ref, m_ref, l_ref, acc_ref):
    """One online-softmax update for a (tm dst x tk src) adjacency tile."""
    k = pl.program_id(1)
    nk = pl.num_programs(1)

    @pl.when(k == 0)
    def _init():
        m_ref[...] = jnp.full_like(m_ref, -jnp.inf)
        l_ref[...] = jnp.zeros_like(l_ref)
        acc_ref[...] = jnp.zeros_like(acc_ref)

    # e = beta * cos.  beta is folded into the (tm, din) dst operand (cheap)
    # instead of scaling the (tm, tk) matmul result (VALU-heavy on v6e/v7x).
    nh_dst_b = nh_dst * beta.astype(nh_dst.dtype)
    e = lax.dot_general(
        nh_dst_b, nh_src,
        dimension_numbers=(((1,), (1,)), ((), ())),
        preferred_element_type=jnp.float32,
    )                                                            # (tm, tk) f32

    # Single select for the no-edge bias (finite sentinel: -inf would NaN the
    # running-max rescale for zero-in-degree rows).
    mask = adj_tile != 0
    e = jnp.where(mask, e, jnp.float32(-1e30))

    m_prev = m_ref[...]
    m_new = jnp.maximum(m_prev, jnp.max(e, axis=-1, keepdims=True))
    alpha = jnp.exp(m_prev - m_new)
    # Keep the masked exp: for rows whose running max is still at the sentinel
    # value, exp(e - m_new) == 1 on masked entries and must be zeroed.
    p = jnp.where(mask, jnp.exp(e - m_new), jnp.float32(0.0))

    l_ref[...] = alpha * l_ref[...] + jnp.sum(p, axis=-1, keepdims=True)
    acc_ref[...] = alpha * acc_ref[...] + jnp.dot(
        p.astype(jnp.bfloat16), x_src, preferred_element_type=jnp.float32)
    m_ref[...] = m_new

    @pl.when(k == nk - 1)
    def _finalize():
        l = l_ref[...]
        # Rows with zero in-edges (l == 0) produce 0 (empty-sum aggregate).
        inv_l = jnp.where(l > 0.0, pl.reciprocal(l, approx=True), jnp.float32(0.0))
        h = (acc_ref[...] * inv_l).astype(jnp.bfloat16)          # (tm, din_p)
        out = jnp.dot(h, w_ref[...], preferred_element_type=jnp.float32)
        out_ref[...] = out.astype(out_ref.dtype)


def _agnn_kernel_resident(normh_ref, feat_ref, adj_ref, w_ref, beta_ref, out_ref,
                          m_ref, l_ref, acc_ref):
    # norm_h / features fully VMEM-resident (single-buffered); slice tiles.
    i = pl.program_id(0)
    k = pl.program_id(1)
    tm = acc_ref.shape[0]
    tk = adj_ref.shape[1]
    dst = pl.multiple_of(i * tm, tm)
    src = pl.multiple_of(k * tk, tk)
    nh_dst = normh_ref[pl.ds(dst, tm), :]                        # (tm, din_p) bf16
    nh_src = normh_ref[pl.ds(src, tk), :]                        # (tk, din_p) bf16
    x_src = feat_ref[pl.ds(src, tk), :]                          # (tk, din_p) bf16
    _agnn_step(nh_dst, nh_src, x_src, adj_ref[...], beta_ref[0],
               w_ref, out_ref, m_ref, l_ref, acc_ref)


def _agnn_kernel_streamed(nh_dst_ref, nh_src_ref, feat_src_ref, adj_ref, w_ref,
                          beta_ref, out_ref, m_ref, l_ref, acc_ref):
    # Large-N fallback: norm_h / features streamed per tile by BlockSpec.
    _agnn_step(nh_dst_ref[...], nh_src_ref[...], feat_src_ref[...], adj_ref[...],
               beta_ref[0], w_ref, out_ref, m_ref, l_ref, acc_ref)


def agnn_forward(features, adj, weight_t, beta, *, tm=256, tk=1024, residency="auto"):
    """features: (N, D_in); adj: (N, N) {0,1} (any dtype); weight_t: (D_in, D_out);
    beta: (1,) f32.  Returns (N, D_out) f32."""
    N, Din = features.shape
    Dout = weight_t.shape[1]

    din_p = _pad_feature_dim(Din)
    dout_p = _pad_feature_dim(Dout)
    n_128 = _round_up(N, 128)
    tm = min(tm, n_128)
    tk = min(tk, n_128)
    n_pad = _round_up(N, int(np.lcm(tm, tk)))
    assert n_pad % tm == 0 and n_pad % tk == 0

    # --- wrapper-side prep (all O(N*D) or O(N^2) int8, plain XLA) -----------
    feat32 = features.astype(jnp.float32)
    inv_norm = 1.0 / jnp.maximum(
        jnp.linalg.norm(feat32, axis=-1, keepdims=True), 1e-12)
    norm_h = feat32 * inv_norm                                   # hoisted L2 normalize

    feat_p = jnp.zeros((n_pad, din_p), jnp.bfloat16).at[:N, :Din].set(
        feat32.astype(jnp.bfloat16))                             # bf16 residents
    normh_p = jnp.zeros((n_pad, din_p), jnp.bfloat16).at[:N, :Din].set(
        norm_h.astype(jnp.bfloat16))
    adj_p = jnp.zeros((n_pad, n_pad), jnp.int8).at[:N, :N].set(
        (adj > 0).astype(jnp.int8))                              # int8 adjacency stream
    w_p = jnp.zeros((din_p, dout_p), jnp.bfloat16).at[:Din, :Dout].set(
        weight_t.astype(jnp.bfloat16))
    beta = jnp.asarray(beta, jnp.float32).reshape((1,))

    grid = (n_pad // tm, n_pad // tk)

    # --- VMEM plan (generation-aware) ---------------------------------------
    vmem_cap = _vmem_capacity_bytes()
    vmem_limit = max(32 * 1024 * 1024, min(int(vmem_cap * 0.9), 120 * 1024 * 1024))
    resident_bytes = (
        2 * n_pad * din_p * 2          # norm_h + features, bf16, single-buffered
        + din_p * dout_p * 2           # weight, bf16, single-buffered
        + 2 * tm * tk                  # adjacency tile, int8, double-buffered
        + 2 * tm * dout_p * 4          # output block, f32, double-buffered
        + tm * din_p * 4 + 2 * tm * 4  # acc / m / l scratch
    )
    headroom = 8 * 1024 * 1024
    if residency == "auto":
        residency = "resident" if resident_bytes + headroom <= vmem_limit else "streamed"

    scratch_shapes = [
        pltpu.VMEM((tm, 1), jnp.float32),       # running max m
        pltpu.VMEM((tm, 1), jnp.float32),       # running denom l
        pltpu.VMEM((tm, din_p), jnp.float32),   # running weighted-sum acc
    ]
    compiler_params = pltpu.CompilerParams(
        dimension_semantics=("parallel", "arbitrary"),
        vmem_limit_bytes=vmem_limit,
    )
    out_shape = jax.ShapeDtypeStruct((n_pad, dout_p), jnp.float32)
    out_spec = pl.BlockSpec((tm, dout_p), lambda i, k: (i, 0))

    if residency == "resident":
        out_p = pl.pallas_call(
            _agnn_kernel_resident,
            out_shape=out_shape,
            grid=grid,
            in_specs=[
                pl.BlockSpec(memory_space=pltpu.MemorySpace.VMEM),   # norm_h (resident, 1x)
                pl.BlockSpec(memory_space=pltpu.MemorySpace.VMEM),   # features (resident, 1x)
                pl.BlockSpec((tm, tk), lambda i, k: (i, k)),         # adjacency tiles (int8)
                pl.BlockSpec(memory_space=pltpu.MemorySpace.VMEM),   # weight (resident, 1x)
                pl.BlockSpec(memory_space=pltpu.MemorySpace.SMEM),   # beta scalar
            ],
            out_specs=out_spec,
            scratch_shapes=scratch_shapes,
            compiler_params=compiler_params,
        )(normh_p, feat_p, adj_p, w_p, beta)
    else:
        # Streaming fallback (large N / small VMEM): src tiles re-fetched per k
        # step; HBM overhead is ~4*din_p/tm bytes per adjacency byte.
        out_p = pl.pallas_call(
            _agnn_kernel_streamed,
            out_shape=out_shape,
            grid=grid,
            in_specs=[
                pl.BlockSpec((tm, din_p), lambda i, k: (i, 0)),      # norm_h dst tile
                pl.BlockSpec((tk, din_p), lambda i, k: (k, 0)),      # norm_h src tile
                pl.BlockSpec((tk, din_p), lambda i, k: (k, 0)),      # features src tile
                pl.BlockSpec((tm, tk), lambda i, k: (i, k)),         # adjacency tiles
                pl.BlockSpec(memory_space=pltpu.MemorySpace.VMEM),   # weight (resident)
                pl.BlockSpec(memory_space=pltpu.MemorySpace.SMEM),   # beta scalar
            ],
            out_specs=out_spec,
            scratch_shapes=scratch_shapes,
            compiler_params=compiler_params,
        )(normh_p, normh_p, feat_p, adj_p, w_p, beta)

    return out_p[:N, :Dout]


def reference_forward(features, adj, weight_t, beta):
    mask = adj > 0
    norm_h = features / jnp.maximum(
        jnp.linalg.norm(features, axis=-1, keepdims=True), 1e-12)
    cos = norm_h @ norm_h.T
    e = jnp.where(mask, beta[0] * cos, -1e30)
    e = e - jnp.max(e, axis=-1, keepdims=True)
    p = jnp.exp(e) * mask
    denom = jnp.sum(p, axis=-1, keepdims=True)
    p = jnp.where(denom > 0, p / denom, 0.0)
    h = p @ features
    return h @ weight_t


if __name__ == "__main__":
    key = jax.random.PRNGKey(0)
    k_feat, k_adj, k_w = jax.random.split(key, 3)

    N, D_IN, D_OUT = 256, 32, 48
    TM, TK = 128, 128          # small tiles -> 2x2 grid exercises the online softmax

    features = jax.random.normal(k_feat, (N, D_IN), dtype=jnp.float32)

    # random directed adjacency with self-loops (every dst has >=1 in-edge)
    adj = jax.random.uniform(k_adj, (N, N)) < 0.15
    adj = jnp.logical_or(adj, jnp.eye(N, dtype=bool)).astype(jnp.int8)

    # xavier_normal_ init for nn.Linear(in_dim, out_dim, bias=False), gain=1
    std = np.sqrt(2.0 / (D_IN + D_OUT))
    w = std * jax.random.normal(k_w, (D_OUT, D_IN), dtype=jnp.float32)  # torch layout
    weight_t = w.T                                                       # (D_in, D_out)

    beta = jnp.array([1.0], dtype=jnp.float32)   # learnable scalar (init_beta=1.0)

    ref = reference_forward(features, adj, weight_t, beta)

    # Default (auto -> VMEM-resident) path.
    out = agnn_forward(features, adj, weight_t, beta, tm=TM, tk=TK)
    out = jax.block_until_ready(out)
    # bf16 MXU inputs (f32 accumulation) + approx reciprocal -> ~1e-2 accuracy.
    np.testing.assert_allclose(np.asarray(out), np.asarray(ref), rtol=2e-2, atol=2e-2)

    # Also exercise the streamed large-N fallback path on the same inputs.
    out_s = agnn_forward(features, adj, weight_t, beta, tm=TM, tk=TK,
                         residency="streamed")
    out_s = jax.block_until_ready(out_s)
    np.testing.assert_allclose(np.asarray(out_s), np.asarray(ref), rtol=2e-2, atol=2e-2)

    print("KERNEL_OK")
</pallas_src>

<mosaic_0001>
module attributes {stable_mosaic.version = 11 : i64} {
  func.func @_agnn_kernel_resident(%arg0: i32, %arg1: i32, %arg2: memref<256x128xbf16, #tpu.memory_space<vmem>>, %arg3: memref<256x128xbf16, #tpu.memory_space<vmem>>, %arg4: memref<128x128xi8, #tpu.memory_space<vmem>>, %arg5: memref<128x128xbf16, #tpu.memory_space<vmem>>, %arg6: memref<1xf32, #tpu.memory_space<smem>>, %arg7: memref<128x128xf32, #tpu.memory_space<vmem>>, %arg8: memref<128x1xf32, #tpu.memory_space<vmem>>, %arg9: memref<128x1xf32, #tpu.memory_space<vmem>>, %arg10: memref<128x128xf32, #tpu.memory_space<vmem>>) attributes {dimension_semantics = [#tpu.dimension_semantics<parallel>, #tpu.dimension_semantics<arbitrary>], iteration_bounds = array<i64: 2, 2>, scalar_prefetch = 0 : i64, scratch_operands = 3 : i64, tpu.core_type = #tpu.core_type<tc>, window_params = [{pipeline_mode = #tpu.pipeline_mode<synchronous>, transform_indices = @transform_0, window_bounds = array<i64: 256, 128>}, {pipeline_mode = #tpu.pipeline_mode<synchronous>, transform_indices = @transform_1, window_bounds = array<i64: 256, 128>}, {transform_indices = @transform_2, window_bounds = array<i64: 128, 128>}, {pipeline_mode = #tpu.pipeline_mode<synchronous>, transform_indices = @transform_3, window_bounds = array<i64: 128, 128>}, {transform_indices = @transform_4, window_bounds = array<i64: 1>}, {transform_indices = @transform_5, window_bounds = array<i64: 128, 128>}]} {
    %c128_i32 = arith.constant 128 : i32
    %0 = arith.muli %arg0, %c128_i32 : i32
    %1 = tpu.assume_multiple %0, 128 : i32
    %c128_i32_0 = arith.constant 128 : i32
    %2 = arith.muli %arg1, %c128_i32_0 : i32
    %3 = tpu.assume_multiple %2, 128 : i32
    %4 = arith.index_cast %1 : i32 to index
    %c0 = arith.constant 0 : index
    %5 = vector.load %arg2[%4, %c0] : memref<256x128xbf16, #tpu.memory_space<vmem>>, vector<128x128xbf16>
    %6 = arith.index_cast %3 : i32 to index
    %c0_1 = arith.constant 0 : index
    %7 = vector.load %arg2[%6, %c0_1] : memref<256x128xbf16, #tpu.memory_space<vmem>>, vector<128x128xbf16>
    %8 = arith.index_cast %3 : i32 to index
    %c0_2 = arith.constant 0 : index
    %9 = vector.load %arg3[%8, %c0_2] : memref<256x128xbf16, #tpu.memory_space<vmem>>, vector<128x128xbf16>
    %c0_3 = arith.constant 0 : index
    %c0_4 = arith.constant 0 : index
    %10 = vector.load %arg4[%c0_3, %c0_4] : memref<128x128xi8, #tpu.memory_space<vmem>>, vector<128x128xi8>
    %c0_5 = arith.constant 0 : index
    %11 = memref.load %arg6[%c0_5] : memref<1xf32, #tpu.memory_space<smem>>
    %c0_i32 = arith.constant 0 : i32
    %12 = arith.cmpi eq, %arg1, %c0_i32 : i32
    %13 = arith.extui %12 : i1 to i32
    %c0_i32_6 = arith.constant 0 : i32
    %14 = arith.cmpi ne, %13, %c0_i32_6 : i32
    scf.if %14 {
      %cst_25 = arith.constant 0xFF800000 : f32
      %51 = vector.broadcast %cst_25 : f32 to vector<128x1xf32>
      %c0_26 = arith.constant 0 : index
      %c0_27 = arith.constant 0 : index
      %52 = vector.load %arg8[%c0_26, %c0_27] : memref<128x1xf32, #tpu.memory_space<vmem>>, vector<128x1xf32>
      tpu.vector_store %arg8[%c0_26, %c0_27], %51 {strides = array<i32>} : memref<128x1xf32, #tpu.memory_space<vmem>>, vector<128x1xf32>,
      %cst_28 = arith.constant 0.000000e+00 : f32
      %53 = vector.broadcast %cst_28 : f32 to vector<128x1xf32>
      %c0_29 = arith.constant 0 : index
      %c0_30 = arith.constant 0 : index
      %54 = vector.load %arg9[%c0_29, %c0_30] : memref<128x1xf32, #tpu.memory_space<vmem>>, vector<128x1xf32>
      tpu.vector_store %arg9[%c0_29, %c0_30], %53 {strides = array<i32>} : memref<128x1xf32, #tpu.memory_space<vmem>>, vector<128x1xf32>,
      %cst_31 = arith.constant 0.000000e+00 : f32
      %55 = vector.broadcast %cst_31 : f32 to vector<128x128xf32>
      %c0_32 = arith.constant 0 : index
      %c0_33 = arith.constant 0 : index
      %56 = vector.load %arg10[%c0_32, %c0_33] : memref<128x128xf32, #tpu.memory_space<vmem>>, vector<128x128xf32>
      tpu.vector_store %arg10[%c0_32, %c0_33], %55 {strides = array<i32>} : memref<128x128xf32, #tpu.memory_space<vmem>>, vector<128x128xf32>,
    } else {
    }
    %15 = arith.truncf %11 : f32 to bf16
    %16 = vector.broadcast %15 : bf16 to vector<128x128xbf16>
    %17 = arith.mulf %5, %16 : vector<128x128xbf16>
    %cst = arith.constant dense<0.000000e+00> : vector<128x128xf32>
    %18 = tpu.matmul %17, %7, %cst {dimension_numbers = #tpu.dot_dimension_numbers<[1], [1], [0], [0], [0, 0, 1, 0], [], []>} : vector<128x128xbf16>, vector<128x128xbf16>, vector<128x128xf32> -> vector<128x128xf32>
    %c0_i8 = arith.constant 0 : i8
    %19 = vector.broadcast %c0_i8 : i8 to vector<128x128xi8>
    %20 = arith.cmpi ne, %10, %19 : vector<128x128xi8>
    %cst_7 = arith.constant -1.000000e+30 : f32
    %21 = vector.broadcast %cst_7 : f32 to vector<128x128xf32>
    %22 = arith.select %20, %18, %21 : vector<128x128xi1>, vector<128x128xf32>
    %c0_8 = arith.constant 0 : index
    %c0_9 = arith.constant 0 : index
    %23 = vector.load %arg8[%c0_8, %c0_9] : memref<128x1xf32, #tpu.memory_space<vmem>>, vector<128x1xf32>
    %cst_10 = arith.constant dense<0xFF800000> : vector<128xf32>
    %24 = vector.multi_reduction <maximumf>, %22, %cst_10 [1] : vector<128x128xf32> to vector<128xf32>
    %25 = vector.shape_cast %24 : vector<128xf32> to vector<128x1xf32>
    %26 = arith.maximumf %23, %25 : vector<128x1xf32>
    %27 = arith.subf %23, %26 : vector<128x1xf32>
    %28 = math.exp %27 : vector<128x1xf32>
    %29 = vector.broadcast %26 : vector<128x1xf32> to vector<128x128xf32>
    %30 = arith.subf %22, %29 : vector<128x128xf32>
    %31 = math.exp %30 : vector<128x128xf32>
    %cst_11 = arith.constant 0.000000e+00 : f32
    %32 = vector.broadcast %cst_11 : f32 to vector<128x128xf32>
    %33 = arith.select %20, %31, %32 : vector<128x128xi1>, vector<128x128xf32>
    %c0_12 = arith.constant 0 : index
    %c0_13 = arith.constant 0 : index
    %34 = vector.load %arg9[%c0_12, %c0_13] : memref<128x1xf32, #tpu.memory_space<vmem>>, vector<128x1xf32>
    %35 = arith.mulf %28, %34 : vector<128x1xf32>
    %cst_14 = arith.constant dense<0.000000e+00> : vector<128xf32>
    %36 = vector.multi_reduction <add>, %33, %cst_14 [1] : vector<128x128xf32> to vector<128xf32>
    %37 = vector.shape_cast %36 : vector<128xf32> to vector<128x1xf32>
    %38 = arith.addf %35, %37 : vector<128x1xf32>
    %c0_15 = arith.constant 0 : index
    %c0_16 = arith.constant 0 : index
    %39 = vector.load %arg9[%c0_15, %c0_16] : memref<128x1xf32, #tpu.memory_space<vmem>>, vector<128x1xf32>
    tpu.vector_store %arg9[%c0_15, %c0_16], %38 {strides = array<i32>} : memref<128x1xf32, #tpu.memory_space<vmem>>, vector<128x1xf32>,
    %c0_17 = arith.constant 0 : index
    %c0_18 = arith.constant 0 : index
    %40 = vector.load %arg10[%c0_17, %c0_18] : memref<128x128xf32, #tpu.memory_space<vmem>>, vector<128x128xf32>
    %41 = vector.broadcast %28 : vector<128x1xf32> to vector<128x128xf32>
    %42 = arith.mulf %41, %40 : vector<128x128xf32>
    %43 = arith.truncf %33 : vector<128x128xf32> to vector<128x128xbf16>
    %cst_19 = arith.constant dense<0.000000e+00> : vector<128x128xf32>
    %44 = tpu.matmul %43, %9, %cst_19 {dimension_numbers = #tpu.dot_dimension_numbers<[1], [0], [0], [1], [0, 0, 1, 1], [], []>} : vector<128x128xbf16>, vector<128x128xbf16>, vector<128x128xf32> -> vector<128x128xf32>
    %45 = arith.addf %42, %44 : vector<128x128xf32>
    %c0_20 = arith.constant 0 : index
    %c0_21 = arith.constant 0 : index
    %46 = vector.load %arg10[%c0_20, %c0_21] : memref<128x128xf32, #tpu.memory_space<vmem>>, vector<128x128xf32>
    tpu.vector_store %arg10[%c0_20, %c0_21], %45 {strides = array<i32>} : memref<128x128xf32, #tpu.memory_space<vmem>>, vector<128x128xf32>,
    %c0_22 = arith.constant 0 : index
    %c0_23 = arith.constant 0 : index
    %47 = vector.load %arg8[%c0_22, %c0_23] : memref<128x1xf32, #tpu.memory_space<vmem>>, vector<128x1xf32>
    tpu.vector_store %arg8[%c0_22, %c0_23], %26 {strides = array<i32>} : memref<128x1xf32, #tpu.memory_space<vmem>>, vector<128x1xf32>,
    %c1_i32 = arith.constant 1 : i32
    %48 = arith.cmpi eq, %arg1, %c1_i32 : i32
    %49 = arith.extui %48 : i1 to i32
    %c0_i32_24 = arith.constant 0 : i32
    %50 = arith.cmpi ne, %49, %c0_i32_24 : i32
    scf.if %50 {
      %c0_25 = arith.constant 0 : index
      %c0_26 = arith.constant 0 : index
      %51 = vector.load %arg9[%c0_25, %c0_26] : memref<128x1xf32, #tpu.memory_space<vmem>>, vector<128x1xf32>
      %cst_27 = arith.constant 0.000000e+00 : f32
      %52 = vector.broadcast %cst_27 : f32 to vector<128x1xf32>
      %53 = arith.cmpf ogt, %51, %52 : vector<128x1xf32>
      %54 = tpu.reciprocal %51 {approx = true} : vector<128x1xf32> -> vector<128x1xf32>
      %cst_28 = arith.constant 0.000000e+00 : f32
      %55 = vector.broadcast %cst_28 : f32 to vector<128x1xf32>
      %56 = arith.select %53, %54, %55 : vector<128x1xi1>, vector<128x1xf32>
      %c0_29 = arith.constant 0 : index
      %c0_30 = arith.constant 0 : index
      %57 = vector.load %arg10[%c0_29, %c0_30] : memref<128x128xf32, #tpu.memory_space<vmem>>, vector<128x128xf32>
      %58 = vector.broadcast %56 : vector<128x1xf32> to vector<128x128xf32>
      %59 = arith.mulf %57, %58 : vector<128x128xf32>
      %60 = arith.truncf %59 : vector<128x128xf32> to vector<128x128xbf16>
      %c0_31 = arith.constant 0 : index
      %c0_32 = arith.constant 0 : index
      %61 = vector.load %arg5[%c0_31, %c0_32] : memref<128x128xbf16, #tpu.memory_space<vmem>>, vector<128x128xbf16>
      %cst_33 = arith.constant dense<0.000000e+00> : vector<128x128xf32>
      %62 = tpu.matmul %60, %61, %cst_33 {dimension_numbers = #tpu.dot_dimension_numbers<[1], [0], [0], [1], [0, 0, 1, 1], [], []>} : vector<128x128xbf16>, vector<128x128xbf16>, vector<128x128xf32> -> vector<128x128xf32>
      %c0_34 = arith.constant 0 : index
      %c0_35 = arith.constant 0 : index
      %63 = vector.load %arg7[%c0_34, %c0_35] : memref<128x128xf32, #tpu.memory_space<vmem>>, vector<128x128xf32>
      tpu.vector_store %arg7[%c0_34, %c0_35], %62 {strides = array<i32>} : memref<128x128xf32, #tpu.memory_space<vmem>>, vector<128x128xf32>,
    } else {
    }
    return
  }
  func.func @transform_0(%arg0: i32, %arg1: i32) -> (i32, i32) {
    %c0_i32 = arith.constant 0 : i32
    %c0_i32_0 = arith.constant 0 : i32
    %c0_i32_1 = arith.constant 0 : i32
    return %c0_i32, %c0_i32_0 : i32, i32
  }
  func.func @transform_1(%arg0: i32, %arg1: i32) -> (i32, i32) {
    %c0_i32 = arith.constant 0 : i32
    %c0_i32_0 = arith.constant 0 : i32
    %c0_i32_1 = arith.constant 0 : i32
    return %c0_i32, %c0_i32_0 : i32, i32
  }
  func.func @transform_2(%arg0: i32, %arg1: i32) -> (i32, i32) {
    %c0_i32 = arith.constant 0 : i32
    return %arg0, %arg1 : i32, i32
  }
  func.func @transform_3(%arg0: i32, %arg1: i32) -> (i32, i32) {
    %c0_i32 = arith.constant 0 : i32
    %c0_i32_0 = arith.constant 0 : i32
    %c0_i32_1 = arith.constant 0 : i32
    return %c0_i32, %c0_i32_0 : i32, i32
  }
  func.func @transform_4(%arg0: i32, %arg1: i32) -> i32 {
    %c0_i32 = arith.constant 0 : i32
    %c0_i32_0 = arith.constant 0 : i32
    return %c0_i32 : i32
  }
  func.func @transform_5(%arg0: i32, %arg1: i32) -> (i32, i32) {
    %c0_i32 = arith.constant 0 : i32
    %c0_i32_0 = arith.constant 0 : i32
    return %arg0, %c0_i32 : i32, i32
  }
}

</mosaic_0001>

<llo_original>
// kernel: tpu_custom_call.1
$region0: #{tpu_custom_call.1}
  #allocation0 [shape = 'u32[]', space=smem, size = 0x4, offset = 0x4, fixed_abs, tag = 'smem constant byte address 0x4 - core index']
  #allocation1 [shape = 'u32[144,128]{1,0:T(1,128)}', space=vmem, size = 0x12000, scoped, tag = 'internal scratch']
  #allocation2 [shape = 'f32[128,1]{1,0:T(8,128)}', space=vmem, size = 0x10000, scoped, tag = 'scratch operand']
  #allocation3 [shape = 'f32[128,1]{1,0:T(8,128)}', space=vmem, size = 0x10000, scoped, tag = 'scratch operand']
  #allocation4 [shape = 'f32[128,128]{1,0:T(8,128)}', space=vmem, size = 0x10000, scoped, tag = 'scratch operand']
  #allocation5 [shape = 'f32[1]{0:T(128)S(6)}', space=smem, size = 0x200, scoped, tag = 'scoped memory for tpu_custom_call.1']
  %s0 = inlined_call_operand.hbm [shape: bf16[256,128], index: 0, kind: input, shape index: {}]
  %s1 = inlined_call_operand.hbm [shape: bf16[256,128], index: 1, kind: input, shape index: {}]
  %s2 = inlined_call_operand.hbm [shape: s8[256,256], index: 2, kind: input, shape index: {}]
  %s3 = inlined_call_operand.hbm [shape: bf16[128,128], index: 3, kind: input, shape index: {}]
  %s4 = inlined_call_operand.<no memory space> [shape: f32[1], index: 4, kind: input, shape index: {}]
  %s5 = inlined_call_operand.hbm [shape: f32[256,128], index: 5, kind: output, shape index: {}]
  %s6 = sld [smem:[#allocation0]]
  $region77: #{tpu_custom_call.1} parent=0
    _
  %s8 = ssub.s32 1, %s6
  %s9 = scalar_select 0, %s8, %s6
  %10 = sst [smem:[#allocation5]] %s4
  $region1: #{tpu_custom_call.1} parent=0
    #allocation6 [shape = 'u8[65536]{0}', space=vmem, size = 0x10000, scoped, tag = 'input window, operand 0, single buffered']
    #allocation7 [shape = 's32[2]{0}', space=sflag, size = 0x8, scoped, tag = 'scoped memory for tpu_custom_call.1']
    #allocation8 [shape = 's32[2]{0}', space=sflag, size = 0x8, scoped, tag = 'scoped memory for tpu_custom_call.1']
    #allocation9 [shape = 'u8[65536]{0}', space=vmem, size = 0x10000, scoped, tag = 'input window, operand 1, single buffered']
    #allocation10 [shape = 's32[1]{0}', space=sflag, size = 0x4, scoped, tag = 'scoped memory for tpu_custom_call.1']
    #allocation11 [shape = 'u8[32768]{0}', space=vmem, size = 0x8000, scoped, tag = 'input window, operand 2']
    #allocation12 [shape = 'u8[32768]{0}', space=vmem, size = 0x8000, scoped, tag = 'input window, operand 3, single buffered']
    #allocation13 [shape = 'u8[131072]{0}', space=vmem, size = 0x20000, scoped, tag = 'output window, operand 0']
    %11 = vsyncpa [#allocation7], 0
    %12 = vsyncpa [#allocation10], 0
    %13 = vsyncpa [#allocation8], 0
    %s14 = scalar_lea.sflag [#allocation8], 1
    %15 = vsyncpa %s14, 0
    loop: start=0, step=1, limit=6
    $region2: #{tpu_custom_call.1} parent=1 // loop_pre_header
      _
    $region3: #{tpu_custom_call.1} parent=1 // loop_header
      %s17 = sphi 0, %s21
      %p18 = scmp.ge.s32.totalorder %s17, 6
      %s24 = sphi 0, %s36
      %s25 = sphi 0, %s32
      %s26 = sphi 0, %s24
      %s27 = sphi 0, %s25
      %s28 = sphi 0, %s26
      %s29 = sphi 0, %s27
      %s37 = sphi 0, %s37
      %s39 = sphi 0, %s37
      %s40 = sphi 0, %s39
      %s54 = sphi 0, %s40
      %s58 = sphi 0, %s58
      %s60 = sphi 0, %s58
      %s61 = sphi 0, %s60
      %s75 = sphi 0, %s61
      %s83 = sphi 0, %s85
      %s86 = sphi 0, %s83
      %s87 = sphi 0, %s86
      %s103 = sphi 0, %s87
      %s107 = sphi 0, %s107
      %s109 = sphi 0, %s107
      %s110 = sphi 0, %s109
      %s124 = sphi 0, %s110
      %s128 = sphi 0, %s128
      %s130 = sphi 0, %s128
      %s131 = sphi 0, %s130
      %s145 = sphi 0, %s131
      %s151 = sphi 0, %s153
      %s154 = sphi 0, %s151
      %s155 = sphi 0, %s154
      %s171 = sphi 0, %s155
    $region4: #{tpu_custom_call.1} parent=1 // loop_header_branch
      %20 = sbr.rel (%p18) target = $region8
    $region5: #{tpu_custom_call.1} parent=1 // loop_body
      %s22 = ssub.s32 %s17, 1
      %s23 = ssub.s32 %s17, 2
      %s30 = sadd.s32 1, %s25
      %p31 = scmp.ge.s32.totalorder %s30, 2
      %s32 = scalar_select %p31, 0, %s30
      %s33 = sadd.s32 1, %s24
      %s34 = scalar_select %p31, %s33, %s24
      %p35 = scmp.ge.s32.totalorder %s34, 2
      %s36 = scalar_select %p35, 0, %s34
      %s38 = sadd.s32 %s37, 1
      %p41 = scmp.eq.s32.totalorder %s17, 3
      %p42 = scmp.ne.s32.totalorder %s37, %s39
      %p43 = scmp.eq.s32.totalorder %s17, 0
      %p44 = por %p42, %p43
      %p45 = scmp.ne.s32.totalorder %s37, %s39
      %p46 = scmp.eq.s32.totalorder %s22, 3
      %p47 = por %p45, %p46
      %p48 = scmp.ne.s32.totalorder %s39, %s40
      %p49 = scmp.eq.s32.totalorder %s22, 0
      %p50 = por %p48, %p49
      %p51 = scmp.ne.s32.totalorder %s39, %s40
      %p52 = scmp.eq.s32.totalorder %s23, 3
      %p53 = por %p51, %p52
      %p55 = scmp.ne.s32.totalorder %s40, %s54
      %p56 = scmp.eq.s32.totalorder %s23, 0
      %p57 = por %p55, %p56
      %s59 = sadd.s32 %s58, 1
      %p62 = scmp.eq.s32.totalorder %s17, 3
      %p63 = scmp.ne.s32.totalorder %s58, %s60
      %p64 = scmp.eq.s32.totalorder %s17, 0
      %p65 = por %p63, %p64
      %p66 = scmp.ne.s32.totalorder %s58, %s60
      %p67 = scmp.eq.s32.totalorder %s22, 3
      %p68 = por %p66, %p67
      %p69 = scmp.ne.s32.totalorder %s60, %s61
      %p70 = scmp.eq.s32.totalorder %s22, 0
      %p71 = por %p69, %p70
      %p72 = scmp.ne.s32.totalorder %s60, %s61
      %p73 = scmp.eq.s32.totalorder %s23, 3
      %p74 = por %p72, %p73
      %p76 = scmp.ne.s32.totalorder %s61, %s75
      %p77 = scmp.eq.s32.totalorder %s23, 0
      %p78 = por %p76, %p77
      %s79 = ssub.s32 %s24, %s36
      %s80 = ssub.s32 %s25, %s32
      %s81 = sor.u32 %s79, %s80
      %p82 = scmp.eq.s32.totalorder %s81, 0
      %s84 = sadd.s32 %s83, 1
      %s85 = scalar_select %p82, %s83, %s84
      %p88 = pneg %p82
      %p89 = scmp.eq.s32.totalorder %s17, 3
      %p90 = por %p88, %p89
      %p91 = scmp.ne.s32.totalorder %s83, %s86
      %p92 = scmp.eq.s32.totalorder %s17, 0
      %p93 = por %p91, %p92
      %p94 = scmp.ne.s32.totalorder %s83, %s86
      %p95 = scmp.eq.s32.totalorder %s22, 3
      %p96 = por %p94, %p95
      %p97 = scmp.ne.s32.totalorder %s86, %s87
      %p98 = scmp.eq.s32.totalorder %s22, 0
      %p99 = por %p97, %p98
      %p100 = scmp.ne.s32.totalorder %s86, %s87
      %p101 = scmp.eq.s32.totalorder %s23, 3
      %p102 = por %p100, %p101
      %p104 = scmp.ne.s32.totalorder %s87, %s103
      %p105 = scmp.eq.s32.totalorder %s23, 0
      %p106 = por %p104, %p105
      %s108 = sadd.s32 %s107, 1
      %p111 = scmp.eq.s32.totalorder %s17, 3
      %p112 = scmp.ne.s32.totalorder %s107, %s109
      %p113 = scmp.eq.s32.totalorder %s17, 0
      %p114 = por %p112, %p113
      %p115 = scmp.ne.s32.totalorder %s107, %s109
      %p116 = scmp.eq.s32.totalorder %s22, 3
      %p117 = por %p115, %p116
      %p118 = scmp.ne.s32.totalorder %s109, %s110
      %p119 = scmp.eq.s32.totalorder %s22, 0
      %p120 = por %p118, %p119
      %p121 = scmp.ne.s32.totalorder %s109, %s110
      %p122 = scmp.eq.s32.totalorder %s23, 3
      %p123 = por %p121, %p122
      %p125 = scmp.ne.s32.totalorder %s110, %s124
      %p126 = scmp.eq.s32.totalorder %s23, 0
      %p127 = por %p125, %p126
      %s129 = sadd.s32 %s128, 1
      %p132 = scmp.eq.s32.totalorder %s17, 3
      %p133 = scmp.ne.s32.totalorder %s128, %s130
      %p134 = scmp.eq.s32.totalorder %s17, 0
      %p135 = por %p133, %p134
      %p136 = scmp.ne.s32.totalorder %s128, %s130
      %p137 = scmp.eq.s32.totalorder %s22, 3
      %p138 = por %p136, %p137
      %p139 = scmp.ne.s32.totalorder %s130, %s131
      %p140 = scmp.eq.s32.totalorder %s22, 0
      %p141 = por %p139, %p140
      %p142 = scmp.ne.s32.totalorder %s130, %s131
      %p143 = scmp.eq.s32.totalorder %s23, 3
      %p144 = por %p142, %p143
      %p146 = scmp.ne.s32.totalorder %s131, %s145
      %p147 = scmp.eq.s32.totalorder %s23, 0
      %p148 = por %p146, %p147
      %s149 = ssub.s32 %s24, %s36
      %p150 = scmp.eq.s32.totalorder %s149, 0
      %s152 = sadd.s32 %s151, 1
      %s153 = scalar_select %p150, %s151, %s152
      %p156 = pneg %p150
      %p157 = scmp.eq.s32.totalorder %s17, 3
      %p158 = por %p156, %p157
      %p159 = scmp.ne.s32.totalorder %s151, %s154
      %p160 = scmp.eq.s32.totalorder %s17, 0
      %p161 = por %p159, %p160
      %p162 = scmp.ne.s32.totalorder %s151, %s154
      %p163 = scmp.eq.s32.totalorder %s22, 3
      %p164 = por %p162, %p163
      %p165 = scmp.ne.s32.totalorder %s154, %s155
      %p166 = scmp.eq.s32.totalorder %s22, 0
      %p167 = por %p165, %p166
      %p168 = scmp.ne.s32.totalorder %s154, %s155
      %p169 = scmp.eq.s32.totalorder %s23, 3
      %p170 = por %p168, %p169
      %p172 = scmp.ne.s32.totalorder %s155, %s171
      %p173 = scmp.eq.s32.totalorder %s23, 0
      %p174 = por %p172, %p173
      %p175 = scmp.le.s32.totalorder 1, %s17
      %p176 = scmp.lt.s32.totalorder %s17, 5
      %p177 = pnand %p175, %p176
      %p178 = pneg %p177
      // Predicated region
      $region9: #{tpu_custom_call.1} parent=5 // pred_check
        _
      $region10: #{tpu_custom_call.1} parent=5 // pred_check_branch
        %180 = sbr.rel (%p177) target = $region12
      $region11: #{tpu_custom_call.1} parent=5 // pred_region
        %s181 = ssub.s32 %s17, 1
        // Predicated region
        $region13: #{tpu_custom_call.1} parent=11 // pred_check
          %p182 = pneg %p50
        $region14: #{tpu_custom_call.1} parent=11 // pred_check_branch
          %184 = sbr.rel (%p182) target = $region16
        $region15: #{tpu_custom_call.1} parent=11 // pred_region
          %s186 = ssub.s32 2048, 2048
          %187 = vsyncadd [#allocation7], %s186
          %s188 = sshll.u32 [#allocation6], 4
          %s189 = int_to_ptr.vmem [resolvable:$true] %s188
          %194 = dma.hbm_to_vmem [thread:$0]  %s0, 2048, %s189, [#allocation7], 64, 64, 4
        $region16: #{tpu_custom_call.1} parent=11 // pred_fallthru
          _
        // Predicated region
        $region17: #{tpu_custom_call.1} parent=11 // pred_check
          %p195 = pneg %p71
        $region18: #{tpu_custom_call.1} parent=11 // pred_check_branch
          %197 = sbr.rel (%p195) target = $region20
        $region19: #{tpu_custom_call.1} parent=11 // pred_region
          %s199 = ssub.s32 2048, 2048
          %200 = vsyncadd [#allocation10], %s199
          %s201 = sshll.u32 [#allocation9], 4
          %s202 = int_to_ptr.vmem [resolvable:$true] %s201
          %207 = dma.hbm_to_vmem [thread:$0]  %s1, 2048, %s202, [#allocation10], 64, 64, 4
        $region20: #{tpu_custom_call.1} parent=11 // pred_fallthru
          _
        // Predicated region
        $region21: #{tpu_custom_call.1} parent=11 // pred_check
          %p208 = pneg %p120
        $region22: #{tpu_custom_call.1} parent=11 // pred_check_branch
          %210 = sbr.rel (%p208) target = $region24
        $region23: #{tpu_custom_call.1} parent=11 // pred_region
          %s212 = ssub.s32 1024, 1024
          %213 = vsyncadd [#allocation10], %s212
          %s214 = sshll.u32 [#allocation12], 4
          %s215 = int_to_ptr.vmem [resolvable:$true] %s214
          %220 = dma.hbm_to_vmem [thread:$0]  %s3, 1024, %s215, [#allocation10], 64, 64, 4
        $region24: #{tpu_custom_call.1} parent=11 // pred_fallthru
          _
        // Predicated region
        $region25: #{tpu_custom_call.1} parent=11 // pred_check
          %p221 = pneg %p141
        $region26: #{tpu_custom_call.1} parent=11 // pred_check_branch
          %223 = sbr.rel (%p221) target = $region28
        $region27: #{tpu_custom_call.1} parent=11 // pred_region
          _
        $region28: #{tpu_custom_call.1} parent=11 // pred_fallthru
          _
      $region12: #{tpu_custom_call.1} parent=5 // pred_fallthru
        _
      %p224 = scmp.lt.s32.totalorder %s17, 4
      // Predicated region
      $region29: #{tpu_custom_call.1} parent=5 // pred_check
        %p225 = pneg %p224
      $region30: #{tpu_custom_call.1} parent=5 // pred_check_branch
        %227 = sbr.rel (%p225) target = $region32
      $region31: #{tpu_custom_call.1} parent=5 // pred_region
        // Predicated region
        $region33: #{tpu_custom_call.1} parent=31 // pred_check
          %p228 = pneg %p93
        $region34: #{tpu_custom_call.1} parent=31 // pred_check_branch
          %230 = sbr.rel (%p228) target = $region36
        $region35: #{tpu_custom_call.1} parent=31 // pred_region
          %s231 = sand.u32 %s17, 1
          %s232 = scalar_lea.sflag [#allocation7], %s231
          %s233 = sand.u32 %s83, 1
          %s234 = smul.addr %s233, 32
          %s235 = scalar_lea.vmem [#allocation11], %s234
          %s236 = smul.u32 4, %s24
          %s238 = ssub.s32 512, 512
          %239 = vsyncadd %s232, %s238
          %s240 = smul.addr %s236, 2
          %s241 = sadd.s32 %s25, %s240
          %s242 = smul.addr %s241, 128
          %s243 = scalar_lea.hbm %s2, %s242
          %s244 = sshll.u32 %s235, 4
          %s245 = int_to_ptr.vmem [resolvable:$true] %s244
          %250 = dma.hbm_to_vmem [thread:$0]  %s243, 512, %s245, %s232, 256, 128, 8
        $region36: #{tpu_custom_call.1} parent=31 // pred_fallthru
          _
      $region32: #{tpu_custom_call.1} parent=5 // pred_fallthru
        _
      %p251 = scmp.le.s32.totalorder 1, %s17
      %p252 = scmp.lt.s32.totalorder %s17, 5
      %p253 = pnand %p251, %p252
      %p254 = pneg %p253
      // Predicated region
      $region37: #{tpu_custom_call.1} parent=5 // pred_check
        _
      $region38: #{tpu_custom_call.1} parent=5 // pred_check_branch
        %256 = sbr.rel (%p253) target = $region40
      $region39: #{tpu_custom_call.1} parent=5 // pred_region
        %s257 = ssub.s32 %s17, 1
        // Predicated region
        $region41: #{tpu_custom_call.1} parent=39 // pred_check
          %p258 = pneg %p50
        $region42: #{tpu_custom_call.1} parent=39 // pred_check_branch
          %260 = sbr.rel (%p258) target = $region44
        $region43: #{tpu_custom_call.1} parent=39 // pred_region
          %261 = dma.done [#allocation7], 2048
        $region44: #{tpu_custom_call.1} parent=39 // pred_fallthru
          _
        // Predicated region
        $region45: #{tpu_custom_call.1} parent=39 // pred_check
          %p262 = pneg %p71
        $region46: #{tpu_custom_call.1} parent=39 // pred_check_branch
          %264 = sbr.rel (%p262) target = $region48
        $region47: #{tpu_custom_call.1} parent=39 // pred_region
          %265 = dma.done [#allocation10], 2048
        $region48: #{tpu_custom_call.1} parent=39 // pred_fallthru
          _
        %s266 = sand.u32 %s22, 1
        %s267 = scalar_lea.sflag [#allocation7], %s266
        %s268 = sand.u32 %s86, 1
        %s269 = smul.addr %s268, 32
        %s270 = scalar_lea.vmem [#allocation11], %s269
        // Predicated region
        $region49: #{tpu_custom_call.1} parent=39 // pred_check
          %p271 = pneg %p99
        $region50: #{tpu_custom_call.1} parent=39 // pred_check_branch
          %273 = sbr.rel (%p271) target = $region52
        $region51: #{tpu_custom_call.1} parent=39 // pred_region
          %274 = dma.done %s267, 512
        $region52: #{tpu_custom_call.1} parent=39 // pred_fallthru
          _
        // Predicated region
        $region53: #{tpu_custom_call.1} parent=39 // pred_check
          %p275 = pneg %p120
        $region54: #{tpu_custom_call.1} parent=39 // pred_check_branch
          %277 = sbr.rel (%p275) target = $region56
        $region55: #{tpu_custom_call.1} parent=39 // pred_region
          %278 = dma.done [#allocation10], 1024
        $region56: #{tpu_custom_call.1} parent=39 // pred_fallthru
          _
        %p279 = pneg %p50
        %p280 = pneg %p47
        %p281 = pneg %p71
        %p282 = pneg %p68
        %s283 = sand.u32 %s22, 1
        %s284 = scalar_lea.sflag [#allocation7], %s283
        %s285 = sand.u32 %s86, 1
        %s286 = smul.addr %s285, 32
        %s287 = scalar_lea.vmem [#allocation11], %s286
        %p288 = pneg %p99
        %p289 = pneg %p96
        %p290 = pneg %p120
        %p291 = pneg %p117
        %p292 = pneg %p141
        %p293 = pneg %p138
        %p294 = pneg %p167
        %p295 = pneg %p164
        %s296 = sand.u32 %s154, 1
        %s297 = scalar_lea.sflag [#allocation8], %s296
        %s298 = sand.u32 %s154, 1
        %s299 = smul.addr %s298, 128
        %s300 = scalar_lea.vmem [#allocation13], %s299
        %s301 = smul.u32 4, %s26
        %s302 = smul.u32 16, %s26
        %s306 = smul.u32 %s26, 128
        %s307 = smul.u32 %s27, 128
        %s308 = sshra.s32 %s306, 3
        %s309 = sand.u32 %s306, 7
        %s310 = smul.addr %s308, 4
        %s311 = scalar_lea.vmem [#allocation6], %s310
        %v312 = vld [vmem:[%s311] sm:$0xf]
        %v313 = vld [vmem:[%s311 + $0x4] sm:$0xf]
        %v314 = vld [vmem:[%s311 + $0x8] sm:$0xf]
        %v315 = vld [vmem:[%s311 + $0xc] sm:$0xf]
        %v316 = vld [vmem:[%s311 + $0x10] sm:$0xf]
        %v317 = vld [vmem:[%s311 + $0x14] sm:$0xf]
        %v318 = vld [vmem:[%s311 + $0x18] sm:$0xf]
        %v319 = vld [vmem:[%s311 + $0x1c] sm:$0xf]
        %v320 = vld [vmem:[%s311 + $0x20] sm:$0xf]
        %v321 = vld [vmem:[%s311 + $0x24] sm:$0xf]
        %v322 = vld [vmem:[%s311 + $0x28] sm:$0xf]
        %v323 = vld [vmem:[%s311 + $0x2c] sm:$0xf]
        %v324 = vld [vmem:[%s311 + $0x30] sm:$0xf]
        %v325 = vld [vmem:[%s311 + $0x34] sm:$0xf]
        %v326 = vld [vmem:[%s311 + $0x38] sm:$0xf]
        %v327 = vld [vmem:[%s311 + $0x3c] sm:$0xf]
        %s328 = sshra.s32 %s307, 3
        %s329 = sand.u32 %s307, 7
        %s330 = smul.addr %s328, 4
        %s331 = scalar_lea.vmem [#allocation6], %s330
        %v332 = vld [vmem:[%s331] sm:$0xf]
        %v333 = vld [vmem:[%s331 + $0x4] sm:$0xf]
        %v334 = vld [vmem:[%s331 + $0x8] sm:$0xf]
        %v335 = vld [vmem:[%s331 + $0xc] sm:$0xf]
        %v336 = vld [vmem:[%s331 + $0x10] sm:$0xf]
        %v337 = vld [vmem:[%s331 + $0x14] sm:$0xf]
        %v338 = vld [vmem:[%s331 + $0x18] sm:$0xf]
        %v339 = vld [vmem:[%s331 + $0x1c] sm:$0xf]
        %v340 = vld [vmem:[%s331 + $0x20] sm:$0xf]
        %v341 = vld [vmem:[%s331 + $0x24] sm:$0xf]
        %v342 = vld [vmem:[%s331 + $0x28] sm:$0xf]
        %v343 = vld [vmem:[%s331 + $0x2c] sm:$0xf]
        %v344 = vld [vmem:[%s331 + $0x30] sm:$0xf]
        %v345 = vld [vmem:[%s331 + $0x34] sm:$0xf]
        %v346 = vld [vmem:[%s331 + $0x38] sm:$0xf]
        %v347 = vld [vmem:[%s331 + $0x3c] sm:$0xf]
        %s348 = smul.addr %s328, 4
        %s349 = scalar_lea.vmem [#allocation9], %s348
        %v350 = vld [vmem:[%s349] sm:$0xf]
        %v351 = vld [vmem:[%s349 + $0x4] sm:$0xf]
        %v352 = vld [vmem:[%s349 + $0x8] sm:$0xf]
        %v353 = vld [vmem:[%s349 + $0xc] sm:$0xf]
        %v354 = vld [vmem:[%s349 + $0x10] sm:$0xf]
        %v355 = vld [vmem:[%s349 + $0x14] sm:$0xf]
        %v356 = vld [vmem:[%s349 + $0x18] sm:$0xf]
        %v357 = vld [vmem:[%s349 + $0x1c] sm:$0xf]
        %v358 = vld [vmem:[%s349 + $0x20] sm:$0xf]
        %v359 = vld [vmem:[%s349 + $0x24] sm:$0xf]
        %v360 = vld [vmem:[%s349 + $0x28] sm:$0xf]
        %v361 = vld [vmem:[%s349 + $0x2c] sm:$0xf]
        %v362 = vld [vmem:[%s349 + $0x30] sm:$0xf]
        %v363 = vld [vmem:[%s349 + $0x34] sm:$0xf]
        %v364 = vld [vmem:[%s349 + $0x38] sm:$0xf]
        %v365 = vld [vmem:[%s349 + $0x3c] sm:$0xf]
        %v366 = vld [vmem:[%s270] sm:$0xff]
        %v367 = vld [vmem:[%s270 + $0x8] sm:$0xff]
        %v368 = vld [vmem:[%s270 + $0x10] sm:$0xff]
        %v369 = vld [vmem:[%s270 + $0x18] sm:$0xff]
        %s370 = sld [smem:[#allocation5]]
        %p371 = scmp.eq.s32.totalorder %s27, 0
        // Predicated region
        $region57: #{tpu_custom_call.1} parent=39 // pred_check
          %p372 = pneg %p371
        $region58: #{tpu_custom_call.1} parent=39 // pred_check_branch
          %374 = sbr.rel (%p372) target = $region60
        $region59: #{tpu_custom_call.1} parent=39 // pred_region
          %vm375 = vcmask 7168
          %376 = vst.msk [vmem:[#allocation2] sm:$0xff] %vm375, -inf
          %377 = vst.msk [vmem:[#allocation2 + $0x8] sm:$0xff] %vm375, -inf
          %378 = vst.msk [vmem:[#allocation2 + $0x10] sm:$0xff] %vm375, -inf
          %379 = vst.msk [vmem:[#allocation2 + $0x18] sm:$0xff] %vm375, -inf
          %380 = vst.msk [vmem:[#allocation2 + $0x20] sm:$0xff] %vm375, -inf
          %381 = vst.msk [vmem:[#allocation2 + $0x28] sm:$0xff] %vm375, -inf
          %382 = vst.msk [vmem:[#allocation2 + $0x30] sm:$0xff] %vm375, -inf
          %383 = vst.msk [vmem:[#allocation2 + $0x38] sm:$0xff] %vm375, -inf
          %384 = vst.msk [vmem:[#allocation2 + $0x40] sm:$0xff] %vm375, -inf
          %385 = vst.msk [vmem:[#allocation2 + $0x48] sm:$0xff] %vm375, -inf
          %386 = vst.msk [vmem:[#allocation2 + $0x50] sm:$0xff] %vm375, -inf
          %387 = vst.msk [vmem:[#allocation2 + $0x58] sm:$0xff] %vm375, -inf
          %388 = vst.msk [vmem:[#allocation2 + $0x60] sm:$0xff] %vm375, -inf
          %389 = vst.msk [vmem:[#allocation2 + $0x68] sm:$0xff] %vm375, -inf
          %390 = vst.msk [vmem:[#allocation2 + $0x70] sm:$0xff] %vm375, -inf
          %391 = vst.msk [vmem:[#allocation2 + $0x78] sm:$0xff] %vm375, -inf
          %392 = vst.msk [vmem:[#allocation3] sm:$0xff] %vm375, 0.0
          %393 = vst.msk [vmem:[#allocation3 + $0x8] sm:$0xff] %vm375, 0.0
          %394 = vst.msk [vmem:[#allocation3 + $0x10] sm:$0xff] %vm375, 0.0
          %395 = vst.msk [vmem:[#allocation3 + $0x18] sm:$0xff] %vm375, 0.0
          %396 = vst.msk [vmem:[#allocation3 + $0x20] sm:$0xff] %vm375, 0.0
          %397 = vst.msk [vmem:[#allocation3 + $0x28] sm:$0xff] %vm375, 0.0
          %398 = vst.msk [vmem:[#allocation3 + $0x30] sm:$0xff] %vm375, 0.0
          %399 = vst.msk [vmem:[#allocation3 + $0x38] sm:$0xff] %vm375, 0.0
          %400 = vst.msk [vmem:[#allocation3 + $0x40] sm:$0xff] %vm375, 0.0
          %401 = vst.msk [vmem:[#allocation3 + $0x48] sm:$0xff] %vm375, 0.0
          %402 = vst.msk [vmem:[#allocation3 + $0x50] sm:$0xff] %vm375, 0.0
          %403 = vst.msk [vmem:[#allocation3 + $0x58] sm:$0xff] %vm375, 0.0
          %404 = vst.msk [vmem:[#allocation3 + $0x60] sm:$0xff] %vm375, 0.0
          %405 = vst.msk [vmem:[#allocation3 + $0x68] sm:$0xff] %vm375, 0.0
          %406 = vst.msk [vmem:[#allocation3 + $0x70] sm:$0xff] %vm375, 0.0
          %407 = vst.msk [vmem:[#allocation3 + $0x78] sm:$0xff] %vm375, 0.0
          %408 = vst [vmem:[#allocation4] sm:$0xff] 0.0
          %409 = vst [vmem:[#allocation4 + $0x8] sm:$0xff] 0.0
          %410 = vst [vmem:[#allocation4 + $0x10] sm:$0xff] 0.0
          %411 = vst [vmem:[#allocation4 + $0x18] sm:$0xff] 0.0
          %412 = vst [vmem:[#allocation4 + $0x20] sm:$0xff] 0.0
          %413 = vst [vmem:[#allocation4 + $0x28] sm:$0xff] 0.0
          %414 = vst [vmem:[#allocation4 + $0x30] sm:$0xff] 0.0
          %415 = vst [vmem:[#allocation4 + $0x38] sm:$0xff] 0.0
          %416 = vst [vmem:[#allocation4 + $0x40] sm:$0xff] 0.0
          %417 = vst [vmem:[#allocation4 + $0x48] sm:$0xff] 0.0
          %418 = vst [vmem:[#allocation4 + $0x50] sm:$0xff] 0.0
          %419 = vst [vmem:[#allocation4 + $0x58] sm:$0xff] 0.0
          %420 = vst [vmem:[#allocation4 + $0x60] sm:$0xff] 0.0
          %421 = vst [vmem:[#allocation4 + $0x68] sm:$0xff] 0.0
          %422 = vst [vmem:[#allocation4 + $0x70] sm:$0xff] 0.0
          %423 = vst [vmem:[#allocation4 + $0x78] sm:$0xff] 0.0
        $region60: #{tpu_custom_call.1} parent=39 // pred_fallthru
          _
        %p425 = scmp.ne.f32.partialorder %s370, %s370
        %s426 = sshrl.u32 %s370, 16
        %s427 = sand.u32 %s426, 1
        %s428 = sadd.s32 32767, %s427
        %s429 = sadd.s32 %s370, %s428
        %s430 = sand.u32 %s429, 4294901760
        %s431 = scalar_select %p425, 2143289344, %s430
        %s433 = sshrl.u32 %s431, 16
        %s434 = sshll.u32 %s433, 16
        %s435 = sor.u32 %s433, %s434
        %v436 = vstv %s435
        %v438 = vmul.bf16 %v312, %v436
        %v439 = vmul.bf16 %v313, %v436
        %v440 = vmul.bf16 %v314, %v436
        %v441 = vmul.bf16 %v315, %v436
        %v442 = vmul.bf16 %v316, %v436
        %v443 = vmul.bf16 %v317, %v436
        %v444 = vmul.bf16 %v318, %v436
        %v445 = vmul.bf16 %v319, %v436
        %v446 = vmul.bf16 %v320, %v436
        %v447 = vmul.bf16 %v321, %v436
        %v448 = vmul.bf16 %v322, %v436
        %v449 = vmul.bf16 %v323, %v436
        %v450 = vmul.bf16 %v324, %v436
        %v451 = vmul.bf16 %v325, %v436
        %v452 = vmul.bf16 %v326, %v436
        %v453 = vmul.bf16 %v327, %v436
        %v470 = vunpack.c.l.b16 %v438
        %v471 = vunpack.c.l.b16 %v439
        %v472 = vunpack.c.l.b16 %v440
        %v473 = vunpack.c.l.b16 %v441
        %v474 = vunpack.c.l.b16 %v442
        %v475 = vunpack.c.l.b16 %v443
        %v476 = vunpack.c.l.b16 %v444
        %v477 = vunpack.c.l.b16 %v445
        %v478 = vunpack.c.l.b16 %v446
        %v479 = vunpack.c.l.b16 %v447
        %v480 = vunpack.c.l.b16 %v448
        %v481 = vunpack.c.l.b16 %v449
        %v482 = vunpack.c.l.b16 %v450
        %v483 = vunpack.c.l.b16 %v451
        %v484 = vunpack.c.l.b16 %v452
        %v485 = vunpack.c.l.b16 %v453
        %v486 = vpack.c.b16 %v471, %v470
        %v487 = vpack.c.b16 %v473, %v472
        %v488 = vpack.c.b16 %v475, %v474
        %v489 = vpack.c.b16 %v477, %v476
        %v490 = vpack.c.b16 %v479, %v478
        %v491 = vpack.c.b16 %v481, %v480
        %v492 = vpack.c.b16 %v483, %v482
        %v493 = vpack.c.b16 %v485, %v484
        %v518 = vunpack.c.l.b16 %v332
        %v519 = vunpack.c.l.b16 %v333
        %v520 = vunpack.c.l.b16 %v334
        %v521 = vunpack.c.l.b16 %v335
        %v522 = vunpack.c.l.b16 %v336
        %v523 = vunpack.c.l.b16 %v337
        %v524 = vunpack.c.l.b16 %v338
        %v525 = vunpack.c.l.b16 %v339
        %v526 = vunpack.c.l.b16 %v340
        %v527 = vunpack.c.l.b16 %v341
        %v528 = vunpack.c.l.b16 %v342
        %v529 = vunpack.c.l.b16 %v343
        %v530 = vunpack.c.l.b16 %v344
        %v531 = vunpack.c.l.b16 %v345
        %v532 = vunpack.c.l.b16 %v346
        %v533 = vunpack.c.l.b16 %v347
        %v534 = vpack.c.b16 %v519, %v518
        %v535 = vpack.c.b16 %v521, %v520
        %v536 = vpack.c.b16 %v523, %v522
        %v537 = vpack.c.b16 %v525, %v524
        %v538 = vpack.c.b16 %v527, %v526
        %v539 = vpack.c.b16 %v529, %v528
        %v540 = vpack.c.b16 %v531, %v530
        %v541 = vpack.c.b16 %v533, %v532
        %550 = vmatprep.subr.bf16.mxu0 0
        %551 = vmatpush1.bf16.xpose.msra.mxu0 %v534
        %552 = vmatprep.subr.bf16.mxu0 0
        %553 = vmatpush1.bf16.xpose.msra.mxu0 %v535
        %554 = vmatprep.subr.bf16.mxu0 0
        %555 = vmatpush1.bf16.xpose.msra.mxu0 %v536
        %556 = vmatprep.subr.bf16.mxu0 0
        %557 = vmatpush1.bf16.xpose.msra.mxu0 %v537
        %558 = vmatprep.subr.bf16.mxu0 0
        %559 = vmatpush1.bf16.xpose.msra.mxu0 %v538
        %560 = vmatprep.subr.bf16.mxu0 0
        %561 = vmatpush1.bf16.xpose.msra.mxu0 %v539
        %562 = vmatprep.subr.bf16.mxu0 0
        %563 = vmatpush1.bf16.xpose.msra.mxu0 %v540
        %564 = vmatprep.subr.bf16.mxu0 0
        %565 = vmatpush1.bf16.xpose.msra.mxu0 %v541
        %566 = vmatprep.subr.bf16.mxu0 0
        %567 = vmatpush1.bf16.xpose.msra.mxu0 0
        %568 = vmatprep.subr.bf16.mxu0 0
        %569 = vmatpush1.bf16.xpose.msra.mxu0 0
        %570 = vmatprep.subr.bf16.mxu0 0
        %571 = vmatpush1.bf16.xpose.msra.mxu0 0
        %572 = vmatprep.subr.bf16.mxu0 0
        %573 = vmatpush1.bf16.xpose.msra.mxu0 0
        %574 = vmatprep.subr.bf16.mxu0 0
        %575 = vmatpush1.bf16.xpose.msra.mxu0 0
        %576 = vmatprep.subr.bf16.mxu0 0
        %577 = vmatpush1.bf16.xpose.msra.mxu0 0
        %578 = vmatprep.subr.bf16.mxu0 0
        %579 = vmatpush1.bf16.xpose.msra.mxu0 0
        %580 = vmatprep.subr.bf16.mxu0 0
        %581 = vmatpush1.bf16.xpose.msra.mxu0 0
        %582 = vmatprep.mubr.bf16.mxu0 0
        %583 = vmatmul.mubr.bf16.gmra.mrb[0].mxu0 %v486
        %v584 = vpop.f32.mrb[0].mxu0
        %v585 = vadd.f32 0.0, %v584
        %v586 = vpop.f32.mrb[0].mxu0
        %v587 = vpop.f32.mrb[0].mxu0
        %v588 = vadd.f32 0.0, %v587
        %v589 = vpop.f32.mrb[0].mxu0
        %590 = vmatprep.mubr.bf16.mxu0 0
        %591 = vmatmul.mubr.bf16.gmra.mrb[0].mxu0 %v487
        %v592 = vpop.f32.mrb[0].mxu0
        %v593 = vadd.f32 0.0, %v592
        %v594 = vpop.f32.mrb[0].mxu0
        %v595 = vpop.f32.mrb[0].mxu0
        %v596 = vadd.f32 0.0, %v595
        %v597 = vpop.f32.mrb[0].mxu0
        %598 = vmatprep.mubr.bf16.mxu0 0
        %599 = vmatmul.mubr.bf16.gmra.mrb[0].mxu0 %v488
        %v600 = vpop.f32.mrb[0].mxu0
        %v601 = vadd.f32 0.0, %v600
        %v602 = vpop.f32.mrb[0].mxu0
        %v603 = vpop.f32.mrb[0].mxu0
        %v604 = vadd.f32 0.0, %v603
        %v605 = vpop.f32.mrb[0].mxu0
        %606 = vmatprep.mubr.bf16.mxu0 0
        %607 = vmatmul.mubr.bf16.gmra.mrb[0].mxu0 %v489
        %v608 = vpop.f32.mrb[0].mxu0
        %v609 = vadd.f32 0.0, %v608
        %v610 = vpop.f32.mrb[0].mxu0
        %v611 = vpop.f32.mrb[0].mxu0
        %v612 = vadd.f32 0.0, %v611
        %v613 = vpop.f32.mrb[0].mxu0
        %614 = vmatprep.mubr.bf16.mxu0 0
        %615 = vmatmul.mubr.bf16.gmra.mrb[0].mxu0 %v490
        %v616 = vpop.f32.mrb[0].mxu0
        %v617 = vadd.f32 0.0, %v616
        %v618 = vpop.f32.mrb[0].mxu0
        %v619 = vpop.f32.mrb[0].mxu0
        %v620 = vadd.f32 0.0, %v619
        %v621 = vpop.f32.mrb[0].mxu0
        %622 = vmatprep.mubr.bf16.mxu0 0
        %623 = vmatmul.mubr.bf16.gmra.mrb[0].mxu0 %v491
        %v624 = vpop.f32.mrb[0].mxu0
        %v625 = vadd.f32 0.0, %v624
        %v626 = vpop.f32.mrb[0].mxu0
        %v627 = vpop.f32.mrb[0].mxu0
        %v628 = vadd.f32 0.0, %v627
        %v629 = vpop.f32.mrb[0].mxu0
        %630 = vmatprep.mubr.bf16.mxu0 0
        %631 = vmatmul.mubr.bf16.gmra.mrb[0].mxu0 %v492
        %v632 = vpop.f32.mrb[0].mxu0
        %v633 = vadd.f32 0.0, %v632
        %v634 = vpop.f32.mrb[0].mxu0
        %v635 = vpop.f32.mrb[0].mxu0
        %v636 = vadd.f32 0.0, %v635
        %v637 = vpop.f32.mrb[0].mxu0
        %638 = vmatprep.mubr.bf16.mxu0 0
        %639 = vmatmul.mubr.bf16.gmra.mrb[0].mxu0 %v493
        %v640 = vpop.f32.mrb[0].mxu0
        %v641 = vadd.f32 0.0, %v640
        %v642 = vpop.f32.mrb[0].mxu0
        %v643 = vpop.f32.mrb[0].mxu0
        %v644 = vadd.f32 0.0, %v643
        %v645 = vpop.f32.mrb[0].mxu0
        %646 = vdwg.mxu0
        %vm647 = vnez %v366
        %vm648 = vnez %v367
        %vm649 = vnez %v368
        %vm650 = vnez %v369
        %v651 = vsel %vm647, 16843009, 0
        %v652 = vsel %vm648, 16843009, 0
        %v653 = vsel %vm649, 16843009, 0
        %v654 = vsel %vm650, 16843009, 0
        %v655 = vunpack.c.0.s8 %v651
        %v656 = vunpack.c.1.s8 %v651
        %v657 = vunpack.c.2.s8 %v651
        %v658 = vunpack.c.3.s8 %v651
        %v659 = vunpack.c.0.s8 %v652
        %v660 = vunpack.c.1.s8 %v652
        %v661 = vunpack.c.2.s8 %v652
        %v662 = vunpack.c.3.s8 %v652
        %v663 = vunpack.c.0.s8 %v653
        %v664 = vunpack.c.1.s8 %v653
        %v665 = vunpack.c.2.s8 %v653
        %v666 = vunpack.c.3.s8 %v653
        %v667 = vunpack.c.0.s8 %v654
        %v668 = vunpack.c.1.s8 %v654
        %v669 = vunpack.c.2.s8 %v654
        %v670 = vunpack.c.3.s8 %v654
        %v671 = vpack.c.b16 %v655, %v655
        %v672 = vpack.c.b8 %v671, %v671
        %v673 = vpack.c.b16 %v656, %v656
        %v674 = vpack.c.b8 %v673, %v673
        %v675 = vpack.c.b16 %v657, %v657
        %v676 = vpack.c.b8 %v675, %v675
        %v677 = vpack.c.b16 %v658, %v658
        %v678 = vpack.c.b8 %v677, %v677
        %v679 = vpack.c.b16 %v659, %v659
        %v680 = vpack.c.b8 %v679, %v679
        %v681 = vpack.c.b16 %v660, %v660
        %v682 = vpack.c.b8 %v681, %v681
        %v683 = vpack.c.b16 %v661, %v661
        %v684 = vpack.c.b8 %v683, %v683
        %v685 = vpack.c.b16 %v662, %v662
        %v686 = vpack.c.b8 %v685, %v685
        %v687 = vpack.c.b16 %v663, %v663
        %v688 = vpack.c.b8 %v687, %v687
        %v689 = vpack.c.b16 %v664, %v664
        %v690 = vpack.c.b8 %v689, %v689
        %v691 = vpack.c.b16 %v665, %v665
        %v692 = vpack.c.b8 %v691, %v691
        %v693 = vpack.c.b16 %v666, %v666
        %v694 = vpack.c.b8 %v693, %v693
        %v695 = vpack.c.b16 %v667, %v667
        %v696 = vpack.c.b8 %v695, %v695
        %v697 = vpack.c.b16 %v668, %v668
        %v698 = vpack.c.b8 %v697, %v697
        %v699 = vpack.c.b16 %v669, %v669
        %v700 = vpack.c.b8 %v699, %v699
        %v701 = vpack.c.b16 %v670, %v670
        %v702 = vpack.c.b8 %v701, %v701
        %vm703 = vnez %v672
        %vm704 = vnez %v674
        %vm705 = vnez %v676
        %vm706 = vnez %v678
        %vm707 = vnez %v680
        %vm708 = vnez %v682
        %vm709 = vnez %v684
        %vm710 = vnez %v686
        %vm711 = vnez %v688
        %vm712 = vnez %v690
        %vm713 = vnez %v692
        %vm714 = vnez %v694
        %vm715 = vnez %v696
        %vm716 = vnez %v698
        %vm717 = vnez %v700
        %vm718 = vnez %v702
        %v719 = vsel %vm703, 16843009, 0
        %v720 = vsel %vm704, 16843009, 0
        %v721 = vsel %vm705, 16843009, 0
        %v722 = vsel %vm706, 16843009, 0
        %v723 = vsel %vm707, 16843009, 0
        %v724 = vsel %vm708, 16843009, 0
        %v725 = vsel %vm709, 16843009, 0
        %v726 = vsel %vm710, 16843009, 0
        %v727 = vsel %vm711, 16843009, 0
        %v728 = vsel %vm712, 16843009, 0
        %v729 = vsel %vm713, 16843009, 0
        %v730 = vsel %vm714, 16843009, 0
        %v731 = vsel %vm715, 16843009, 0
        %v732 = vsel %vm716, 16843009, 0
        %v733 = vsel %vm717, 16843009, 0
        %v734 = vsel %vm718, 16843009, 0
        %v735 = vunpack.c.0.s8 %v719
        %v736 = vunpack.c.0.s8 %v720
        %v737 = vunpack.c.0.s8 %v721
        %v738 = vunpack.c.0.s8 %v722
        %v739 = vunpack.c.0.s8 %v723
        %v740 = vunpack.c.0.s8 %v724
        %v741 = vunpack.c.0.s8 %v725
        %v742 = vunpack.c.0.s8 %v726
        %v743 = vunpack.c.0.s8 %v727
        %v744 = vunpack.c.0.s8 %v728
        %v745 = vunpack.c.0.s8 %v729
        %v746 = vunpack.c.0.s8 %v730
        %v747 = vunpack.c.0.s8 %v731
        %v748 = vunpack.c.0.s8 %v732
        %v749 = vunpack.c.0.s8 %v733
        %v750 = vunpack.c.0.s8 %v734
        %vm751 = vcmp.ne.s32.totalorder %v735, 0
        %vm752 = vcmp.ne.s32.totalorder %v736, 0
        %vm753 = vcmp.ne.s32.totalorder %v737, 0
        %vm754 = vcmp.ne.s32.totalorder %v738, 0
        %vm755 = vcmp.ne.s32.totalorder %v739, 0
        %vm756 = vcmp.ne.s32.totalorder %v740, 0
        %vm757 = vcmp.ne.s32.totalorder %v741, 0
        %vm758 = vcmp.ne.s32.totalorder %v742, 0
        %vm759 = vcmp.ne.s32.totalorder %v743, 0
        %vm760 = vcmp.ne.s32.totalorder %v744, 0
        %vm761 = vcmp.ne.s32.totalorder %v745, 0
        %vm762 = vcmp.ne.s32.totalorder %v746, 0
        %vm763 = vcmp.ne.s32.totalorder %v747, 0
        %vm764 = vcmp.ne.s32.totalorder %v748, 0
        %vm765 = vcmp.ne.s32.totalorder %v749, 0
        %vm766 = vcmp.ne.s32.totalorder %v750, 0
        %v767 = vsel %vm751, %v585, -1e+30
        %v768 = vsel %vm752, %v588, -1e+30
        %v769 = vsel %vm753, %v593, -1e+30
        %v770 = vsel %vm754, %v596, -1e+30
        %v771 = vsel %vm755, %v601, -1e+30
        %v772 = vsel %vm756, %v604, -1e+30
        %v773 = vsel %vm757, %v609, -1e+30
        %v774 = vsel %vm758, %v612, -1e+30
        %v775 = vsel %vm759, %v617, -1e+30
        %v776 = vsel %vm760, %v620, -1e+30
        %v777 = vsel %vm761, %v625, -1e+30
        %v778 = vsel %vm762, %v628, -1e+30
        %v779 = vsel %vm763, %v633, -1e+30
        %v780 = vsel %vm764, %v636, -1e+30
        %v781 = vsel %vm765, %v641, -1e+30
        %v782 = vsel %vm766, %v644, -1e+30
        %v783 = vld [vmem:[#allocation2] sm:$0xff]
        %v784 = vld [vmem:[#allocation2 + $0x8] sm:$0xff]
        %v785 = vld [vmem:[#allocation2 + $0x10] sm:$0xff]
        %v786 = vld [vmem:[#allocation2 + $0x18] sm:$0xff]
        %v787 = vld [vmem:[#allocation2 + $0x20] sm:$0xff]
        %v788 = vld [vmem:[#allocation2 + $0x28] sm:$0xff]
        %v789 = vld [vmem:[#allocation2 + $0x30] sm:$0xff]
        %v790 = vld [vmem:[#allocation2 + $0x38] sm:$0xff]
        %v791 = vld [vmem:[#allocation2 + $0x40] sm:$0xff]
        %v792 = vld [vmem:[#allocation2 + $0x48] sm:$0xff]
        %v793 = vld [vmem:[#allocation2 + $0x50] sm:$0xff]
        %v794 = vld [vmem:[#allocation2 + $0x58] sm:$0xff]
        %v795 = vld [vmem:[#allocation2 + $0x60] sm:$0xff]
        %v796 = vld [vmem:[#allocation2 + $0x68] sm:$0xff]
        %v797 = vld [vmem:[#allocation2 + $0x70] sm:$0xff]
        %v798 = vld [vmem:[#allocation2 + $0x78] sm:$0xff]
        %799 = vmax.xlane.f32.xlu0 %v767
        %v800 = vpop.xlane.xlu0 %799
        %801 = vmax.xlane.f32.xlu0 %v768
        %v802 = vpop.xlane.xlu0 %801
        %803 = vmax.xlane.f32.xlu0 %v769
        %v804 = vpop.xlane.xlu0 %803
        %805 = vmax.xlane.f32.xlu0 %v770
        %v806 = vpop.xlane.xlu0 %805
        %807 = vmax.xlane.f32.xlu0 %v771
        %v808 = vpop.xlane.xlu0 %807
        %809 = vmax.xlane.f32.xlu0 %v772
        %v810 = vpop.xlane.xlu0 %809
        %811 = vmax.xlane.f32.xlu0 %v773
        %v812 = vpop.xlane.xlu0 %811
        %813 = vmax.xlane.f32.xlu0 %v774
        %v814 = vpop.xlane.xlu0 %813
        %815 = vmax.xlane.f32.xlu0 %v775
        %v816 = vpop.xlane.xlu0 %815
        %817 = vmax.xlane.f32.xlu0 %v776
        %v818 = vpop.xlane.xlu0 %817
        %819 = vmax.xlane.f32.xlu0 %v777
        %v820 = vpop.xlane.xlu0 %819
        %821 = vmax.xlane.f32.xlu0 %v778
        %v822 = vpop.xlane.xlu0 %821
        %823 = vmax.xlane.f32.xlu0 %v779
        %v824 = vpop.xlane.xlu0 %823
        %825 = vmax.xlane.f32.xlu0 %v780
        %v826 = vpop.xlane.xlu0 %825
        %827 = vmax.xlane.f32.xlu0 %v781
        %v828 = vpop.xlane.xlu0 %827
        %829 = vmax.xlane.f32.xlu0 %v782
        %v830 = vpop.xlane.xlu0 %829
        %v831 = vmax.f32 %v783, %v800
        %v832 = vmax.f32 %v784, %v802
        %v833 = vmax.f32 %v785, %v804
        %v834 = vmax.f32 %v786, %v806
        %v835 = vmax.f32 %v787, %v808
        %v836 = vmax.f32 %v788, %v810
        %v837 = vmax.f32 %v789, %v812
        %v838 = vmax.f32 %v790, %v814
        %v839 = vmax.f32 %v791, %v816
        %v840 = vmax.f32 %v792, %v818
        %v841 = vmax.f32 %v793, %v820
        %v842 = vmax.f32 %v794, %v822
        %v843 = vmax.f32 %v795, %v824
        %v844 = vmax.f32 %v796, %v826
        %v845 = vmax.f32 %v797, %v828
        %v846 = vmax.f32 %v798, %v830
        %v847 = vsub.f32 %v783, %v831
        %v848 = vsub.f32 %v784, %v832
        %v849 = vsub.f32 %v785, %v833
        %v850 = vsub.f32 %v786, %v834
        %v851 = vsub.f32 %v787, %v835
        %v852 = vsub.f32 %v788, %v836
        %v853 = vsub.f32 %v789, %v837
        %v854 = vsub.f32 %v790, %v838
        %v855 = vsub.f32 %v791, %v839
        %v856 = vsub.f32 %v792, %v840
        %v857 = vsub.f32 %v793, %v841
        %v858 = vsub.f32 %v794, %v842
        %v859 = vsub.f32 %v795, %v843
        %v860 = vsub.f32 %v796, %v844
        %v861 = vsub.f32 %v797, %v845
        %v862 = vsub.f32 %v798, %v846
        %v863 = vmul.f32 %v847, 1.442695
        %v864 = vpow.pop %v863
        %v865 = vmul.f32 %v848, 1.442695
        %v866 = vpow.pop %v865
        %v867 = vmul.f32 %v849, 1.442695
        %v868 = vpow.pop %v867
        %v869 = vmul.f32 %v850, 1.442695
        %v870 = vpow.pop %v869
        %v871 = vmul.f32 %v851, 1.442695
        %v872 = vpow.pop %v871
        %v873 = vmul.f32 %v852, 1.442695
        %v874 = vpow.pop %v873
        %v875 = vmul.f32 %v853, 1.442695
        %v876 = vpow.pop %v875
        %v877 = vmul.f32 %v854, 1.442695
        %v878 = vpow.pop %v877
        %v879 = vmul.f32 %v855, 1.442695
        %v880 = vpow.pop %v879
        %v881 = vmul.f32 %v856, 1.442695
        %v882 = vpow.pop %v881
        %v883 = vmul.f32 %v857, 1.442695
        %v884 = vpow.pop %v883
        %v885 = vmul.f32 %v858, 1.442695
        %v886 = vpow.pop %v885
        %v887 = vmul.f32 %v859, 1.442695
        %v888 = vpow.pop %v887
        %v889 = vmul.f32 %v860, 1.442695
        %v890 = vpow.pop %v889
        %v891 = vmul.f32 %v861, 1.442695
        %v892 = vpow.pop %v891
        %v893 = vmul.f32 %v862, 1.442695
        %v894 = vpow.pop %v893
        %896 = vset.pattern.permute.xlu0 0
        %897 = vperm.xlu0 %896, %v831
        %v898 = vpop.permute.xlu0 %897
        %901 = vset.pattern.permute.xlu0 0
        %902 = vperm.xlu0 %901, %v832
        %v903 = vpop.permute.xlu0 %902
        %906 = vset.pattern.permute.xlu0 0
        %907 = vperm.xlu0 %906, %v833
        %v908 = vpop.permute.xlu0 %907
        %911 = vset.pattern.permute.xlu0 0
        %912 = vperm.xlu0 %911, %v834
        %v913 = vpop.permute.xlu0 %912
        %916 = vset.pattern.permute.xlu0 0
        %917 = vperm.xlu0 %916, %v835
        %v918 = vpop.permute.xlu0 %917
        %921 = vset.pattern.permute.xlu0 0
        %922 = vperm.xlu0 %921, %v836
        %v923 = vpop.permute.xlu0 %922
        %926 = vset.pattern.permute.xlu0 0
        %927 = vperm.xlu0 %926, %v837
        %v928 = vpop.permute.xlu0 %927
        %931 = vset.pattern.permute.xlu0 0
        %932 = vperm.xlu0 %931, %v838
        %v933 = vpop.permute.xlu0 %932
        %936 = vset.pattern.permute.xlu0 0
        %937 = vperm.xlu0 %936, %v839
        %v938 = vpop.permute.xlu0 %937
        %941 = vset.pattern.permute.xlu0 0
        %942 = vperm.xlu0 %941, %v840
        %v943 = vpop.permute.xlu0 %942
        %946 = vset.pattern.permute.xlu0 0
        %947 = vperm.xlu0 %946, %v841
        %v948 = vpop.permute.xlu0 %947
        %951 = vset.pattern.permute.xlu0 0
        %952 = vperm.xlu0 %951, %v842
        %v953 = vpop.permute.xlu0 %952
        %956 = vset.pattern.permute.xlu0 0
        %957 = vperm.xlu0 %956, %v843
        %v958 = vpop.permute.xlu0 %957
        %961 = vset.pattern.permute.xlu0 0
        %962 = vperm.xlu0 %961, %v844
        %v963 = vpop.permute.xlu0 %962
        %966 = vset.pattern.permute.xlu0 0
        %967 = vperm.xlu0 %966, %v845
        %v968 = vpop.permute.xlu0 %967
        %971 = vset.pattern.permute.xlu0 0
        %972 = vperm.xlu0 %971, %v846
        %v973 = vpop.permute.xlu0 %972
        %v975 = vsub.f32 %v767, %v898
        %v976 = vsub.f32 %v768, %v903
        %v977 = vsub.f32 %v769, %v908
        %v978 = vsub.f32 %v770, %v913
        %v979 = vsub.f32 %v771, %v918
        %v980 = vsub.f32 %v772, %v923
        %v981 = vsub.f32 %v773, %v928
        %v982 = vsub.f32 %v774, %v933
        %v983 = vsub.f32 %v775, %v938
        %v984 = vsub.f32 %v776, %v943
        %v985 = vsub.f32 %v777, %v948
        %v986 = vsub.f32 %v778, %v953
        %v987 = vsub.f32 %v779, %v958
        %v988 = vsub.f32 %v780, %v963
        %v989 = vsub.f32 %v781, %v968
        %v990 = vsub.f32 %v782, %v973
        %v991 = vmul.f32 %v975, 1.442695
        %v992 = vpow.pop %v991
        %v993 = vmul.f32 %v976, 1.442695
        %v994 = vpow.pop %v993
        %v995 = vmul.f32 %v977, 1.442695
        %v996 = vpow.pop %v995
        %v997 = vmul.f32 %v978, 1.442695
        %v998 = vpow.pop %v997
        %v999 = vmul.f32 %v979, 1.442695
        %v1000 = vpow.pop %v999
        %v1001 = vmul.f32 %v980, 1.442695
        %v1002 = vpow.pop %v1001
        %v1003 = vmul.f32 %v981, 1.442695
        %v1004 = vpow.pop %v1003
        %v1005 = vmul.f32 %v982, 1.442695
        %v1006 = vpow.pop %v1005
        %v1007 = vmul.f32 %v983, 1.442695
        %v1008 = vpow.pop %v1007
        %v1009 = vmul.f32 %v984, 1.442695
        %v1010 = vpow.pop %v1009
        %v1011 = vmul.f32 %v985, 1.442695
        %v1012 = vpow.pop %v1011
        %v1013 = vmul.f32 %v986, 1.442695
        %v1014 = vpow.pop %v1013
        %v1015 = vmul.f32 %v987, 1.442695
        %v1016 = vpow.pop %v1015
        %v1017 = vmul.f32 %v988, 1.442695
        %v1018 = vpow.pop %v1017
        %v1019 = vmul.f32 %v989, 1.442695
        %v1020 = vpow.pop %v1019
        %v1021 = vmul.f32 %v990, 1.442695
        %v1022 = vpow.pop %v1021
        %v1023 = vsel %vm751, %v992, 0.0
        %v1024 = vsel %vm752, %v994, 0.0
        %v1025 = vsel %vm753, %v996, 0.0
        %v1026 = vsel %vm754, %v998, 0.0
        %v1027 = vsel %vm755, %v1000, 0.0
        %v1028 = vsel %vm756, %v1002, 0.0
        %v1029 = vsel %vm757, %v1004, 0.0
        %v1030 = vsel %vm758, %v1006, 0.0
        %v1031 = vsel %vm759, %v1008, 0.0
        %v1032 = vsel %vm760, %v1010, 0.0
        %v1033 = vsel %vm761, %v1012, 0.0
        %v1034 = vsel %vm762, %v1014, 0.0
        %v1035 = vsel %vm763, %v1016, 0.0
        %v1036 = vsel %vm764, %v1018, 0.0
        %v1037 = vsel %vm765, %v1020, 0.0
        %v1038 = vsel %vm766, %v1022, 0.0
        %v1039 = vld [vmem:[#allocation3] sm:$0xff]
        %v1040 = vld [vmem:[#allocation3 + $0x8] sm:$0xff]
        %v1041 = vld [vmem:[#allocation3 + $0x10] sm:$0xff]
        %v1042 = vld [vmem:[#allocation3 + $0x18] sm:$0xff]
        %v1043 = vld [vmem:[#allocation3 + $0x20] sm:$0xff]
        %v1044 = vld [vmem:[#allocation3 + $0x28] sm:$0xff]
        %v1045 = vld [vmem:[#allocation3 + $0x30] sm:$0xff]
        %v1046 = vld [vmem:[#allocation3 + $0x38] sm:$0xff]
        %v1047 = vld [vmem:[#allocation3 + $0x40] sm:$0xff]
        %v1048 = vld [vmem:[#allocation3 + $0x48] sm:$0xff]
        %v1049 = vld [vmem:[#allocation3 + $0x50] sm:$0xff]
        %v1050 = vld [vmem:[#allocation3 + $0x58] sm:$0xff]
        %v1051 = vld [vmem:[#allocation3 + $0x60] sm:$0xff]
        %v1052 = vld [vmem:[#allocation3 + $0x68] sm:$0xff]
        %v1053 = vld [vmem:[#allocation3 + $0x70] sm:$0xff]
        %v1054 = vld [vmem:[#allocation3 + $0x78] sm:$0xff]
        %v1055 = vmul.f32 %v864, %v1039
        %v1056 = vmul.f32 %v866, %v1040
        %v1057 = vmul.f32 %v868, %v1041
        %v1058 = vmul.f32 %v870, %v1042
        %v1059 = vmul.f32 %v872, %v1043
        %v1060 = vmul.f32 %v874, %v1044
        %v1061 = vmul.f32 %v876, %v1045
        %v1062 = vmul.f32 %v878, %v1046
        %v1063 = vmul.f32 %v880, %v1047
        %v1064 = vmul.f32 %v882, %v1048
        %v1065 = vmul.f32 %v884, %v1049
        %v1066 = vmul.f32 %v886, %v1050
        %v1067 = vmul.f32 %v888, %v1051
        %v1068 = vmul.f32 %v890, %v1052
        %v1069 = vmul.f32 %v892, %v1053
        %v1070 = vmul.f32 %v894, %v1054
        %1071 = vadd.xlane.f32.xlu0 %v1023
        %v1072 = vpop.xlane.xlu0 %1071
        %1073 = vadd.xlane.f32.xlu0 %v1024
        %v1074 = vpop.xlane.xlu0 %1073
        %1075 = vadd.xlane.f32.xlu0 %v1025
        %v1076 = vpop.xlane.xlu0 %1075
        %1077 = vadd.xlane.f32.xlu0 %v1026
        %v1078 = vpop.xlane.xlu0 %1077
        %1079 = vadd.xlane.f32.xlu0 %v1027
        %v1080 = vpop.xlane.xlu0 %1079
        %1081 = vadd.xlane.f32.xlu0 %v1028
        %v1082 = vpop.xlane.xlu0 %1081
        %1083 = vadd.xlane.f32.xlu0 %v1029
        %v1084 = vpop.xlane.xlu0 %1083
        %1085 = vadd.xlane.f32.xlu0 %v1030
        %v1086 = vpop.xlane.xlu0 %1085
        %1087 = vadd.xlane.f32.xlu0 %v1031
        %v1088 = vpop.xlane.xlu0 %1087
        %1089 = vadd.xlane.f32.xlu0 %v1032
        %v1090 = vpop.xlane.xlu0 %1089
        %1091 = vadd.xlane.f32.xlu0 %v1033
        %v1092 = vpop.xlane.xlu0 %1091
        %1093 = vadd.xlane.f32.xlu0 %v1034
        %v1094 = vpop.xlane.xlu0 %1093
        %1095 = vadd.xlane.f32.xlu0 %v1035
        %v1096 = vpop.xlane.xlu0 %1095
        %1097 = vadd.xlane.f32.xlu0 %v1036
        %v1098 = vpop.xlane.xlu0 %1097
        %1099 = vadd.xlane.f32.xlu0 %v1037
        %v1100 = vpop.xlane.xlu0 %1099
        %1101 = vadd.xlane.f32.xlu0 %v1038
        %v1102 = vpop.xlane.xlu0 %1101
        %v1103 = vadd.f32 %v1055, %v1072
        %v1104 = vadd.f32 %v1056, %v1074
        %v1105 = vadd.f32 %v1057, %v1076
        %v1106 = vadd.f32 %v1058, %v1078
        %v1107 = vadd.f32 %v1059, %v1080
        %v1108 = vadd.f32 %v1060, %v1082
        %v1109 = vadd.f32 %v1061, %v1084
        %v1110 = vadd.f32 %v1062, %v1086
        %v1111 = vadd.f32 %v1063, %v1088
        %v1112 = vadd.f32 %v1064, %v1090
        %v1113 = vadd.f32 %v1065, %v1092
        %v1114 = vadd.f32 %v1066, %v1094
        %v1115 = vadd.f32 %v1067, %v1096
        %v1116 = vadd.f32 %v1068, %v1098
        %v1117 = vadd.f32 %v1069, %v1100
        %v1118 = vadd.f32 %v1070, %v1102
        %vm1119 = vcmask 7168
        %1120 = vst.msk [vmem:[#allocation3] sm:$0xff] %vm1119, %v1103
        %1121 = vst.msk [vmem:[#allocation3 + $0x8] sm:$0xff] %vm1119, %v1104
        %1122 = vst.msk [vmem:[#allocation3 + $0x10] sm:$0xff] %vm1119, %v1105
        %1123 = vst.msk [vmem:[#allocation3 + $0x18] sm:$0xff] %vm1119, %v1106
        %1124 = vst.msk [vmem:[#allocation3 + $0x20] sm:$0xff] %vm1119, %v1107
        %1125 = vst.msk [vmem:[#allocation3 + $0x28] sm:$0xff] %vm1119, %v1108
        %1126 = vst.msk [vmem:[#allocation3 + $0x30] sm:$0xff] %vm1119, %v1109
        %1127 = vst.msk [vmem:[#allocation3 + $0x38] sm:$0xff] %vm1119, %v1110
        %1128 = vst.msk [vmem:[#allocation3 + $0x40] sm:$0xff] %vm1119, %v1111
        %1129 = vst.msk [vmem:[#allocation3 + $0x48] sm:$0xff] %vm1119, %v1112
        %1130 = vst.msk [vmem:[#allocation3 + $0x50] sm:$0xff] %vm1119, %v1113
        %1131 = vst.msk [vmem:[#allocation3 + $0x58] sm:$0xff] %vm1119, %v1114
        %1132 = vst.msk [vmem:[#allocation3 + $0x60] sm:$0xff] %vm1119, %v1115
        %1133 = vst.msk [vmem:[#allocation3 + $0x68] sm:$0xff] %vm1119, %v1116
        %1134 = vst.msk [vmem:[#allocation3 + $0x70] sm:$0xff] %vm1119, %v1117
        %1135 = vst.msk [vmem:[#allocation3 + $0x78] sm:$0xff] %vm1119, %v1118
        %v1136 = vld [vmem:[#allocation4] sm:$0xff]
        %v1137 = vld [vmem:[#allocation4 + $0x8] sm:$0xff]
        %v1138 = vld [vmem:[#allocation4 + $0x10] sm:$0xff]
        %v1139 = vld [vmem:[#allocation4 + $0x18] sm:$0xff]
        %v1140 = vld [vmem:[#allocation4 + $0x20] sm:$0xff]
        %v1141 = vld [vmem:[#allocation4 + $0x28] sm:$0xff]
        %v1142 = vld [vmem:[#allocation4 + $0x30] sm:$0xff]
        %v1143 = vld [vmem:[#allocation4 + $0x38] sm:$0xff]
        %v1144 = vld [vmem:[#allocation4 + $0x40] sm:$0xff]
        %v1145 = vld [vmem:[#allocation4 + $0x48] sm:$0xff]
        %v1146 = vld [vmem:[#allocation4 + $0x50] sm:$0xff]
        %v1147 = vld [vmem:[#allocation4 + $0x58] sm:$0xff]
        %v1148 = vld [vmem:[#allocation4 + $0x60] sm:$0xff]
        %v1149 = vld [vmem:[#allocation4 + $0x68] sm:$0xff]
        %v1150 = vld [vmem:[#allocation4 + $0x70] sm:$0xff]
        %v1151 = vld [vmem:[#allocation4 + $0x78] sm:$0xff]
        %1153 = vset.pattern.permute.xlu0 0
        %1154 = vperm.xlu0 %1153, %v864
        %v1155 = vpop.permute.xlu0 %1154
        %1158 = vset.pattern.permute.xlu0 0
        %1159 = vperm.xlu0 %1158, %v866
        %v1160 = vpop.permute.xlu0 %1159
        %1163 = vset.pattern.permute.xlu0 0
        %1164 = vperm.xlu0 %1163, %v868
        %v1165 = vpop.permute.xlu0 %1164
        %1168 = vset.pattern.permute.xlu0 0
        %1169 = vperm.xlu0 %1168, %v870
        %v1170 = vpop.permute.xlu0 %1169
        %1173 = vset.pattern.permute.xlu0 0
        %1174 = vperm.xlu0 %1173, %v872
        %v1175 = vpop.permute.xlu0 %1174
        %1178 = vset.pattern.permute.xlu0 0
        %1179 = vperm.xlu0 %1178, %v874
        %v1180 = vpop.permute.xlu0 %1179
        %1183 = vset.pattern.permute.xlu0 0
        %1184 = vperm.xlu0 %1183, %v876
        %v1185 = vpop.permute.xlu0 %1184
        %1188 = vset.pattern.permute.xlu0 0
        %1189 = vperm.xlu0 %1188, %v878
        %v1190 = vpop.permute.xlu0 %1189
        %1193 = vset.pattern.permute.xlu0 0
        %1194 = vperm.xlu0 %1193, %v880
        %v1195 = vpop.permute.xlu0 %1194
        %1198 = vset.pattern.permute.xlu0 0
        %1199 = vperm.xlu0 %1198, %v882
        %v1200 = vpop.permute.xlu0 %1199
        %1203 = vset.pattern.permute.xlu0 0
        %1204 = vperm.xlu0 %1203, %v884
        %v1205 = vpop.permute.xlu0 %1204
        %1208 = vset.pattern.permute.xlu0 0
        %1209 = vperm.xlu0 %1208, %v886
        %v1210 = vpop.permute.xlu0 %1209
        %1213 = vset.pattern.permute.xlu0 0
        %1214 = vperm.xlu0 %1213, %v888
        %v1215 = vpop.permute.xlu0 %1214
        %1218 = vset.pattern.permute.xlu0 0
        %1219 = vperm.xlu0 %1218, %v890
        %v1220 = vpop.permute.xlu0 %1219
        %1223 = vset.pattern.permute.xlu0 0
        %1224 = vperm.xlu0 %1223, %v892
        %v1225 = vpop.permute.xlu0 %1224
        %1228 = vset.pattern.permute.xlu0 0
        %1229 = vperm.xlu0 %1228, %v894
        %v1230 = vpop.permute.xlu0 %1229
        %v1232 = vmul.f32 %v1155, %v1136
        %v1233 = vmul.f32 %v1160, %v1137
        %v1234 = vmul.f32 %v1165, %v1138
        %v1235 = vmul.f32 %v1170, %v1139
        %v1236 = vmul.f32 %v1175, %v1140
        %v1237 = vmul.f32 %v1180, %v1141
        %v1238 = vmul.f32 %v1185, %v1142
        %v1239 = vmul.f32 %v1190, %v1143
        %v1240 = vmul.f32 %v1195, %v1144
        %v1241 = vmul.f32 %v1200, %v1145
        %v1242 = vmul.f32 %v1205, %v1146
        %v1243 = vmul.f32 %v1210, %v1147
        %v1244 = vmul.f32 %v1215, %v1148
        %v1245 = vmul.f32 %v1220, %v1149
        %v1246 = vmul.f32 %v1225, %v1150
        %v1247 = vmul.f32 %v1230, %v1151
        %v1248 = vpack.c.bf16 %v1024, %v1023
        %v1249 = vpack.c.bf16 %v1026, %v1025
        %v1250 = vpack.c.bf16 %v1028, %v1027
        %v1251 = vpack.c.bf16 %v1030, %v1029
        %v1252 = vpack.c.bf16 %v1032, %v1031
        %v1253 = vpack.c.bf16 %v1034, %v1033
        %v1254 = vpack.c.bf16 %v1036, %v1035
        %v1255 = vpack.c.bf16 %v1038, %v1037
        %v1272 = vunpack.c.l.b16 %v350
        %v1273 = vunpack.c.l.b16 %v351
        %v1274 = vunpack.c.l.b16 %v352
        %v1275 = vunpack.c.l.b16 %v353
        %v1276 = vunpack.c.l.b16 %v354
        %v1277 = vunpack.c.l.b16 %v355
        %v1278 = vunpack.c.l.b16 %v356
        %v1279 = vunpack.c.l.b16 %v357
        %v1280 = vunpack.c.l.b16 %v358
        %v1281 = vunpack.c.l.b16 %v359
        %v1282 = vunpack.c.l.b16 %v360
        %v1283 = vunpack.c.l.b16 %v361
        %v1284 = vunpack.c.l.b16 %v362
        %v1285 = vunpack.c.l.b16 %v363
        %v1286 = vunpack.c.l.b16 %v364
        %v1287 = vunpack.c.l.b16 %v365
        %v1288 = vpack.c.b16 %v1273, %v1272
        %v1289 = vpack.c.b16 %v1275, %v1274
        %v1290 = vpack.c.b16 %v1277, %v1276
        %v1291 = vpack.c.b16 %v1279, %v1278
        %v1292 = vpack.c.b16 %v1281, %v1280
        %v1293 = vpack.c.b16 %v1283, %v1282
        %v1294 = vpack.c.b16 %v1285, %v1284
        %v1295 = vpack.c.b16 %v1287, %v1286
        %1304 = vmatprep.subr.bf16.mxu0 0
        %1305 = vmatpush1.bf16.msra.mxu0 %v1288
        %1306 = vmatprep.subr.bf16.mxu0 0
        %1307 = vmatpush1.bf16.msra.mxu0 %v1289
        %1308 = vmatprep.subr.bf16.mxu0 0
        %1309 = vmatpush1.bf16.msra.mxu0 %v1290
        %1310 = vmatprep.subr.bf16.mxu0 0
        %1311 = vmatpush1.bf16.msra.mxu0 %v1291
        %1312 = vmatprep.subr.bf16.mxu0 0
        %1313 = vmatpush1.bf16.msra.mxu0 %v1292
        %1314 = vmatprep.subr.bf16.mxu0 0
        %1315 = vmatpush1.bf16.msra.mxu0 %v1293
        %1316 = vmatprep.subr.bf16.mxu0 0
        %1317 = vmatpush1.bf16.msra.mxu0 %v1294
        %1318 = vmatprep.subr.bf16.mxu0 0
        %1319 = vmatpush1.bf16.msra.mxu0 %v1295
        %1320 = vmatprep.subr.bf16.mxu0 0
        %1321 = vmatpush1.bf16.msra.mxu0 0
        %1322 = vmatprep.subr.bf16.mxu0 0
        %1323 = vmatpush1.bf16.msra.mxu0 0
        %1324 = vmatprep.subr.bf16.mxu0 0
        %1325 = vmatpush1.bf16.msra.mxu0 0
        %1326 = vmatprep.subr.bf16.mxu0 0
        %1327 = vmatpush1.bf16.msra.mxu0 0
        %1328 = vmatprep.subr.bf16.mxu0 0
        %1329 = vmatpush1.bf16.msra.mxu0 0
        %1330 = vmatprep.subr.bf16.mxu0 0
        %1331 = vmatpush1.bf16.msra.mxu0 0
        %1332 = vmatprep.subr.bf16.mxu0 0
        %1333 = vmatpush1.bf16.msra.mxu0 0
        %1334 = vmatprep.subr.bf16.mxu0 0
        %1335 = vmatpush1.bf16.msra.mxu0 0
        %1336 = vmatprep.mubr.bf16.mxu0 0
        %1337 = vmatmul.mubr.bf16.gmra.mrb[0].mxu0 %v1248
        %v1338 = vpop.f32.mrb[0].mxu0
        %v1339 = vadd.f32 0.0, %v1338
        %v1340 = vpop.f32.mrb[0].mxu0
        %v1341 = vpop.f32.mrb[0].mxu0
        %v1342 = vadd.f32 0.0, %v1341
        %v1343 = vpop.f32.mrb[0].mxu0
        %1344 = vmatprep.mubr.bf16.mxu0 0
        %1345 = vmatmul.mubr.bf16.gmra.mrb[0].mxu0 %v1249
        %v1346 = vpop.f32.mrb[0].mxu0
        %v1347 = vadd.f32 0.0, %v1346
        %v1348 = vpop.f32.mrb[0].mxu0
        %v1349 = vpop.f32.mrb[0].mxu0
        %v1350 = vadd.f32 0.0, %v1349
        %v1351 = vpop.f32.mrb[0].mxu0
        %1352 = vmatprep.mubr.bf16.mxu0 0
        %1353 = vmatmul.mubr.bf16.gmra.mrb[0].mxu0 %v1250
        %v1354 = vpop.f32.mrb[0].mxu0
        %v1355 = vadd.f32 0.0, %v1354
        %v1356 = vpop.f32.mrb[0].mxu0
        %v1357 = vpop.f32.mrb[0].mxu0
        %v1358 = vadd.f32 0.0, %v1357
        %v1359 = vpop.f32.mrb[0].mxu0
        %1360 = vmatprep.mubr.bf16.mxu0 0
        %1361 = vmatmul.mubr.bf16.gmra.mrb[0].mxu0 %v1251
        %v1362 = vpop.f32.mrb[0].mxu0
        %v1363 = vadd.f32 0.0, %v1362
        %v1364 = vpop.f32.mrb[0].mxu0
        %v1365 = vpop.f32.mrb[0].mxu0
        %v1366 = vadd.f32 0.0, %v1365
        %v1367 = vpop.f32.mrb[0].mxu0
        %1368 = vmatprep.mubr.bf16.mxu0 0
        %1369 = vmatmul.mubr.bf16.gmra.mrb[0].mxu0 %v1252
        %v1370 = vpop.f32.mrb[0].mxu0
        %v1371 = vadd.f32 0.0, %v1370
        %v1372 = vpop.f32.mrb[0].mxu0
        %v1373 = vpop.f32.mrb[0].mxu0
        %v1374 = vadd.f32 0.0, %v1373
        %v1375 = vpop.f32.mrb[0].mxu0
        %1376 = vmatprep.mubr.bf16.mxu0 0
        %1377 = vmatmul.mubr.bf16.gmra.mrb[0].mxu0 %v1253
        %v1378 = vpop.f32.mrb[0].mxu0
        %v1379 = vadd.f32 0.0, %v1378
        %v1380 = vpop.f32.mrb[0].mxu0
        %v1381 = vpop.f32.mrb[0].mxu0
        %v1382 = vadd.f32 0.0, %v1381
        %v1383 = vpop.f32.mrb[0].mxu0
        %1384 = vmatprep.mubr.bf16.mxu0 0
        %1385 = vmatmul.mubr.bf16.gmra.mrb[0].mxu0 %v1254
        %v1386 = vpop.f32.mrb[0].mxu0
        %v1387 = vadd.f32 0.0, %v1386
        %v1388 = vpop.f32.mrb[0].mxu0
        %v1389 = vpop.f32.mrb[0].mxu0
        %v1390 = vadd.f32 0.0, %v1389
        %v1391 = vpop.f32.mrb[0].mxu0
        %1392 = vmatprep.mubr.bf16.mxu0 0
        %1393 = vmatmul.mubr.bf16.gmra.mrb[0].mxu0 %v1255
        %v1394 = vpop.f32.mrb[0].mxu0
        %v1395 = vadd.f32 0.0, %v1394
        %v1396 = vpop.f32.mrb[0].mxu0
        %v1397 = vpop.f32.mrb[0].mxu0
        %v1398 = vadd.f32 0.0, %v1397
        %v1399 = vpop.f32.mrb[0].mxu0
        %1400 = vdwg.mxu0
        %v1401 = vadd.f32 %v1232, %v1339
        %v1402 = vadd.f32 %v1233, %v1342
        %v1403 = vadd.f32 %v1234, %v1347
        %v1404 = vadd.f32 %v1235, %v1350
        %v1405 = vadd.f32 %v1236, %v1355
        %v1406 = vadd.f32 %v1237, %v1358
        %v1407 = vadd.f32 %v1238, %v1363
        %v1408 = vadd.f32 %v1239, %v1366
        %v1409 = vadd.f32 %v1240, %v1371
        %v1410 = vadd.f32 %v1241, %v1374
        %v1411 = vadd.f32 %v1242, %v1379
        %v1412 = vadd.f32 %v1243, %v1382
        %v1413 = vadd.f32 %v1244, %v1387
        %v1414 = vadd.f32 %v1245, %v1390
        %v1415 = vadd.f32 %v1246, %v1395
        %v1416 = vadd.f32 %v1247, %v1398
        %1417 = vst [vmem:[#allocation4] sm:$0xff] %v1401
        %1418 = vst [vmem:[#allocation4 + $0x8] sm:$0xff] %v1402
        %1419 = vst [vmem:[#allocation4 + $0x10] sm:$0xff] %v1403
        %1420 = vst [vmem:[#allocation4 + $0x18] sm:$0xff] %v1404
        %1421 = vst [vmem:[#allocation4 + $0x20] sm:$0xff] %v1405
        %1422 = vst [vmem:[#allocation4 + $0x28] sm:$0xff] %v1406
        %1423 = vst [vmem:[#allocation4 + $0x30] sm:$0xff] %v1407
        %1424 = vst [vmem:[#allocation4 + $0x38] sm:$0xff] %v1408
        %1425 = vst [vmem:[#allocation4 + $0x40] sm:$0xff] %v1409
        %1426 = vst [vmem:[#allocation4 + $0x48] sm:$0xff] %v1410
        %1427 = vst [vmem:[#allocation4 + $0x50] sm:$0xff] %v1411
        %1428 = vst [vmem:[#allocation4 + $0x58] sm:$0xff] %v1412
        %1429 = vst [vmem:[#allocation4 + $0x60] sm:$0xff] %v1413
        %1430 = vst [vmem:[#allocation4 + $0x68] sm:$0xff] %v1414
        %1431 = vst [vmem:[#allocation4 + $0x70] sm:$0xff] %v1415
        %1432 = vst [vmem:[#allocation4 + $0x78] sm:$0xff] %v1416
        %1433 = vst.msk [vmem:[#allocation2] sm:$0xff] %vm1119, %v831
        %1434 = vst.msk [vmem:[#allocation2 + $0x8] sm:$0xff] %vm1119, %v832
        %1435 = vst.msk [vmem:[#allocation2 + $0x10] sm:$0xff] %vm1119, %v833
        %1436 = vst.msk [vmem:[#allocation2 + $0x18] sm:$0xff] %vm1119, %v834
        %1437 = vst.msk [vmem:[#allocation2 + $0x20] sm:$0xff] %vm1119, %v835
        %1438 = vst.msk [vmem:[#allocation2 + $0x28] sm:$0xff] %vm1119, %v836
        %1439 = vst.msk [vmem:[#allocation2 + $0x30] sm:$0xff] %vm1119, %v837
        %1440 = vst.msk [vmem:[#allocation2 + $0x38] sm:$0xff] %vm1119, %v838
        %1441 = vst.msk [vmem:[#allocation2 + $0x40] sm:$0xff] %vm1119, %v839
        %1442 = vst.msk [vmem:[#allocation2 + $0x48] sm:$0xff] %vm1119, %v840
        %1443 = vst.msk [vmem:[#allocation2 + $0x50] sm:$0xff] %vm1119, %v841
        %1444 = vst.msk [vmem:[#allocation2 + $0x58] sm:$0xff] %vm1119, %v842
        %1445 = vst.msk [vmem:[#allocation2 + $0x60] sm:$0xff] %vm1119, %v843
        %1446 = vst.msk [vmem:[#allocation2 + $0x68] sm:$0xff] %vm1119, %v844
        %1447 = vst.msk [vmem:[#allocation2 + $0x70] sm:$0xff] %vm1119, %v845
        %1448 = vst.msk [vmem:[#allocation2 + $0x78] sm:$0xff] %vm1119, %v846
        %p1449 = scmp.eq.s32.totalorder %s27, 1
        // Predicated region
        $region61: #{tpu_custom_call.1} parent=39 // pred_check
          %p1450 = pneg %p1449
        $region62: #{tpu_custom_call.1} parent=39 // pred_check_branch
          %1452 = sbr.rel (%p1450) target = $region64
        $region63: #{tpu_custom_call.1} parent=39 // pred_region
          %v1453 = vld [vmem:[#allocation3] sm:$0xff]
          %v1454 = vld [vmem:[#allocation3 + $0x8] sm:$0xff]
          %v1455 = vld [vmem:[#allocation3 + $0x10] sm:$0xff]
          %v1456 = vld [vmem:[#allocation3 + $0x18] sm:$0xff]
          %v1457 = vld [vmem:[#allocation3 + $0x20] sm:$0xff]
          %v1458 = vld [vmem:[#allocation3 + $0x28] sm:$0xff]
          %v1459 = vld [vmem:[#allocation3 + $0x30] sm:$0xff]
          %v1460 = vld [vmem:[#allocation3 + $0x38] sm:$0xff]
          %v1461 = vld [vmem:[#allocation3 + $0x40] sm:$0xff]
          %v1462 = vld [vmem:[#allocation3 + $0x48] sm:$0xff]
          %v1463 = vld [vmem:[#allocation3 + $0x50] sm:$0xff]
          %v1464 = vld [vmem:[#allocation3 + $0x58] sm:$0xff]
          %v1465 = vld [vmem:[#allocation3 + $0x60] sm:$0xff]
          %v1466 = vld [vmem:[#allocation3 + $0x68] sm:$0xff]
          %v1467 = vld [vmem:[#allocation3 + $0x70] sm:$0xff]
          %v1468 = vld [vmem:[#allocation3 + $0x78] sm:$0xff]
          %vm1469 = vcmp.gt.f32.partialorder %v1453, 0.0
          %vm1470 = vcmp.gt.f32.partialorder %v1454, 0.0
          %vm1471 = vcmp.gt.f32.partialorder %v1455, 0.0
          %vm1472 = vcmp.gt.f32.partialorder %v1456, 0.0
          %vm1473 = vcmp.gt.f32.partialorder %v1457, 0.0
          %vm1474 = vcmp.gt.f32.partialorder %v1458, 0.0
          %vm1475 = vcmp.gt.f32.partialorder %v1459, 0.0
          %vm1476 = vcmp.gt.f32.partialorder %v1460, 0.0
          %vm1477 = vcmp.gt.f32.partialorder %v1461, 0.0
          %vm1478 = vcmp.gt.f32.partialorder %v1462, 0.0
          %vm1479 = vcmp.gt.f32.partialorder %v1463, 0.0
          %vm1480 = vcmp.gt.f32.partialorder %v1464, 0.0
          %vm1481 = vcmp.gt.f32.partialorder %v1465, 0.0
          %vm1482 = vcmp.gt.f32.partialorder %v1466, 0.0
          %vm1483 = vcmp.gt.f32.partialorder %v1467, 0.0
          %vm1484 = vcmp.gt.f32.partialorder %v1468, 0.0
          %v1485 = vrcp.pop %v1453
          %v1486 = vrcp.pop %v1454
          %v1487 = vrcp.pop %v1455
          %v1488 = vrcp.pop %v1456
          %v1489 = vrcp.pop %v1457
          %v1490 = vrcp.pop %v1458
          %v1491 = vrcp.pop %v1459
          %v1492 = vrcp.pop %v1460
          %v1493 = vrcp.pop %v1461
          %v1494 = vrcp.pop %v1462
          %v1495 = vrcp.pop %v1463
          %v1496 = vrcp.pop %v1464
          %v1497 = vrcp.pop %v1465
          %v1498 = vrcp.pop %v1466
          %v1499 = vrcp.pop %v1467
          %v1500 = vrcp.pop %v1468
          %v1501 = vsel %vm1469, %v1485, 0.0
          %v1502 = vsel %vm1470, %v1486, 0.0
          %v1503 = vsel %vm1471, %v1487, 0.0
          %v1504 = vsel %vm1472, %v1488, 0.0
          %v1505 = vsel %vm1473, %v1489, 0.0
          %v1506 = vsel %vm1474, %v1490, 0.0
          %v1507 = vsel %vm1475, %v1491, 0.0
          %v1508 = vsel %vm1476, %v1492, 0.0
          %v1509 = vsel %vm1477, %v1493, 0.0
          %v1510 = vsel %vm1478, %v1494, 0.0
          %v1511 = vsel %vm1479, %v1495, 0.0
          %v1512 = vsel %vm1480, %v1496, 0.0
          %v1513 = vsel %vm1481, %v1497, 0.0
          %v1514 = vsel %vm1482, %v1498, 0.0
          %v1515 = vsel %vm1483, %v1499, 0.0
          %v1516 = vsel %vm1484, %v1500, 0.0
          %v1517 = vld [vmem:[#allocation4] sm:$0xff]
          %v1518 = vld [vmem:[#allocation4 + $0x8] sm:$0xff]
          %v1519 = vld [vmem:[#allocation4 + $0x10] sm:$0xff]
          %v1520 = vld [vmem:[#allocation4 + $0x18] sm:$0xff]
          %v1521 = vld [vmem:[#allocation4 + $0x20] sm:$0xff]
          %v1522 = vld [vmem:[#allocation4 + $0x28] sm:$0xff]
          %v1523 = vld [vmem:[#allocation4 + $0x30] sm:$0xff]
          %v1524 = vld [vmem:[#allocation4 + $0x38] sm:$0xff]
          %v1525 = vld [vmem:[#allocation4 + $0x40] sm:$0xff]
          %v1526 = vld [vmem:[#allocation4 + $0x48] sm:$0xff]
          %v1527 = vld [vmem:[#allocation4 + $0x50] sm:$0xff]
          %v1528 = vld [vmem:[#allocation4 + $0x58] sm:$0xff]
          %v1529 = vld [vmem:[#allocation4 + $0x60] sm:$0xff]
          %v1530 = vld [vmem:[#allocation4 + $0x68] sm:$0xff]
          %v1531 = vld [vmem:[#allocation4 + $0x70] sm:$0xff]
          %v1532 = vld [vmem:[#allocation4 + $0x78] sm:$0xff]
          %1534 = vset.pattern.permute.xlu0 0
          %1535 = vperm.xlu0 %1534, %v1501
          %v1536 = vpop.permute.xlu0 %1535
          %1539 = vset.pattern.permute.xlu0 0
          %1540 = vperm.xlu0 %1539, %v1502
          %v1541 = vpop.permute.xlu0 %1540
          %1544 = vset.pattern.permute.xlu0 0
          %1545 = vperm.xlu0 %1544, %v1503
          %v1546 = vpop.permute.xlu0 %1545
          %1549 = vset.pattern.permute.xlu0 0
          %1550 = vperm.xlu0 %1549, %v1504
          %v1551 = vpop.permute.xlu0 %1550
          %1554 = vset.pattern.permute.xlu0 0
          %1555 = vperm.xlu0 %1554, %v1505
          %v1556 = vpop.permute.xlu0 %1555
          %1559 = vset.pattern.permute.xlu0 0
          %1560 = vperm.xlu0 %1559, %v1506
          %v1561 = vpop.permute.xlu0 %1560
          %1564 = vset.pattern.permute.xlu0 0
          %1565 = vperm.xlu0 %1564, %v1507
          %v1566 = vpop.permute.xlu0 %1565
          %1569 = vset.pattern.permute.xlu0 0
          %1570 = vperm.xlu0 %1569, %v1508
          %v1571 = vpop.permute.xlu0 %1570
          %1574 = vset.pattern.permute.xlu0 0
          %1575 = vperm.xlu0 %1574, %v1509
          %v1576 = vpop.permute.xlu0 %1575
          %1579 = vset.pattern.permute.xlu0 0
          %1580 = vperm.xlu0 %1579, %v1510
          %v1581 = vpop.permute.xlu0 %1580
          %1584 = vset.pattern.permute.xlu0 0
          %1585 = vperm.xlu0 %1584, %v1511
          %v1586 = vpop.permute.xlu0 %1585
          %1589 = vset.pattern.permute.xlu0 0
          %1590 = vperm.xlu0 %1589, %v1512
          %v1591 = vpop.permute.xlu0 %1590
          %1594 = vset.pattern.permute.xlu0 0
          %1595 = vperm.xlu0 %1594, %v1513
          %v1596 = vpop.permute.xlu0 %1595
          %1599 = vset.pattern.permute.xlu0 0
          %1600 = vperm.xlu0 %1599, %v1514
          %v1601 = vpop.permute.xlu0 %1600
          %1604 = vset.pattern.permute.xlu0 0
          %1605 = vperm.xlu0 %1604, %v1515
          %v1606 = vpop.permute.xlu0 %1605
          %1609 = vset.pattern.permute.xlu0 0
          %1610 = vperm.xlu0 %1609, %v1516
          %v1611 = vpop.permute.xlu0 %1610
          %v1613 = vmul.f32 %v1517, %v1536
          %v1614 = vmul.f32 %v1518, %v1541
          %v1615 = vmul.f32 %v1519, %v1546
          %v1616 = vmul.f32 %v1520, %v1551
          %v1617 = vmul.f32 %v1521, %v1556
          %v1618 = vmul.f32 %v1522, %v1561
          %v1619 = vmul.f32 %v1523, %v1566
          %v1620 = vmul.f32 %v1524, %v1571
          %v1621 = vmul.f32 %v1525, %v1576
          %v1622 = vmul.f32 %v1526, %v1581
          %v1623 = vmul.f32 %v1527, %v1586
          %v1624 = vmul.f32 %v1528, %v1591
          %v1625 = vmul.f32 %v1529, %v1596
          %v1626 = vmul.f32 %v1530, %v1601
          %v1627 = vmul.f32 %v1531, %v1606
          %v1628 = vmul.f32 %v1532, %v1611
          %v1629 = vpack.c.bf16 %v1614, %v1613
          %v1630 = vpack.c.bf16 %v1616, %v1615
          %v1631 = vpack.c.bf16 %v1618, %v1617
          %v1632 = vpack.c.bf16 %v1620, %v1619
          %v1633 = vpack.c.bf16 %v1622, %v1621
          %v1634 = vpack.c.bf16 %v1624, %v1623
          %v1635 = vpack.c.bf16 %v1626, %v1625
          %v1636 = vpack.c.bf16 %v1628, %v1627
          %v1637 = vld [vmem:[#allocation12] sm:$0xf]
          %v1638 = vld [vmem:[#allocation12 + $0x4] sm:$0xf]
          %v1639 = vld [vmem:[#allocation12 + $0x8] sm:$0xf]
          %v1640 = vld [vmem:[#allocation12 + $0xc] sm:$0xf]
          %v1641 = vld [vmem:[#allocation12 + $0x10] sm:$0xf]
          %v1642 = vld [vmem:[#allocation12 + $0x14] sm:$0xf]
          %v1643 = vld [vmem:[#allocation12 + $0x18] sm:$0xf]
          %v1644 = vld [vmem:[#allocation12 + $0x1c] sm:$0xf]
          %v1645 = vld [vmem:[#allocation12 + $0x20] sm:$0xf]
          %v1646 = vld [vmem:[#allocation12 + $0x24] sm:$0xf]
          %v1647 = vld [vmem:[#allocation12 + $0x28] sm:$0xf]
          %v1648 = vld [vmem:[#allocation12 + $0x2c] sm:$0xf]
          %v1649 = vld [vmem:[#allocation12 + $0x30] sm:$0xf]
          %v1650 = vld [vmem:[#allocation12 + $0x34] sm:$0xf]
          %v1651 = vld [vmem:[#allocation12 + $0x38] sm:$0xf]
          %v1652 = vld [vmem:[#allocation12 + $0x3c] sm:$0xf]
          %v1669 = vunpack.c.l.b16 %v1637
          %v1670 = vunpack.c.l.b16 %v1638
          %v1671 = vunpack.c.l.b16 %v1639
          %v1672 = vunpack.c.l.b16 %v1640
          %v1673 = vunpack.c.l.b16 %v1641
          %v1674 = vunpack.c.l.b16 %v1642
          %v1675 = vunpack.c.l.b16 %v1643
          %v1676 = vunpack.c.l.b16 %v1644
          %v1677 = vunpack.c.l.b16 %v1645
          %v1678 = vunpack.c.l.b16 %v1646
          %v1679 = vunpack.c.l.b16 %v1647
          %v1680 = vunpack.c.l.b16 %v1648
          %v1681 = vunpack.c.l.b16 %v1649
          %v1682 = vunpack.c.l.b16 %v1650
          %v1683 = vunpack.c.l.b16 %v1651
          %v1684 = vunpack.c.l.b16 %v1652
          %v1685 = vpack.c.b16 %v1670, %v1669
          %v1686 = vpack.c.b16 %v1672, %v1671
          %v1687 = vpack.c.b16 %v1674, %v1673
          %v1688 = vpack.c.b16 %v1676, %v1675
          %v1689 = vpack.c.b16 %v1678, %v1677
          %v1690 = vpack.c.b16 %v1680, %v1679
          %v1691 = vpack.c.b16 %v1682, %v1681
          %v1692 = vpack.c.b16 %v1684, %v1683
          %1701 = vmatprep.subr.bf16.mxu0 0
          %1702 = vmatpush1.bf16.msra.mxu0 %v1685
          %1703 = vmatprep.subr.bf16.mxu0 0
          %1704 = vmatpush1.bf16.msra.mxu0 %v1686
          %1705 = vmatprep.subr.bf16.mxu0 0
          %1706 = vmatpush1.bf16.msra.mxu0 %v1687
          %1707 = vmatprep.subr.bf16.mxu0 0
          %1708 = vmatpush1.bf16.msra.mxu0 %v1688
          %1709 = vmatprep.subr.bf16.mxu0 0
          %1710 = vmatpush1.bf16.msra.mxu0 %v1689
          %1711 = vmatprep.subr.bf16.mxu0 0
          %1712 = vmatpush1.bf16.msra.mxu0 %v1690
          %1713 = vmatprep.subr.bf16.mxu0 0
          %1714 = vmatpush1.bf16.msra.mxu0 %v1691
          %1715 = vmatprep.subr.bf16.mxu0 0
          %1716 = vmatpush1.bf16.msra.mxu0 %v1692
          %1717 = vmatprep.subr.bf16.mxu0 0
          %1718 = vmatpush1.bf16.msra.mxu0 0
          %1719 = vmatprep.subr.bf16.mxu0 0
          %1720 = vmatpush1.bf16.msra.mxu0 0
          %1721 = vmatprep.subr.bf16.mxu0 0
          %1722 = vmatpush1.bf16.msra.mxu0 0
          %1723 = vmatprep.subr.bf16.mxu0 0
          %1724 = vmatpush1.bf16.msra.mxu0 0
          %1725 = vmatprep.subr.bf16.mxu0 0
          %1726 = vmatpush1.bf16.msra.mxu0 0
          %1727 = vmatprep.subr.bf16.mxu0 0
          %1728 = vmatpush1.bf16.msra.mxu0 0
          %1729 = vmatprep.subr.bf16.mxu0 0
          %1730 = vmatpush1.bf16.msra.mxu0 0
          %1731 = vmatprep.subr.bf16.mxu0 0
          %1732 = vmatpush1.bf16.msra.mxu0 0
          %1733 = vmatprep.mubr.bf16.mxu0 0
          %1734 = vmatmul.mubr.bf16.gmra.mrb[0].mxu0 %v1629
          %v1735 = vpop.f32.mrb[0].mxu0
          %v1736 = vadd.f32 0.0, %v1735
          %v1737 = vpop.f32.mrb[0].mxu0
          %v1738 = vpop.f32.mrb[0].mxu0
          %v1739 = vadd.f32 0.0, %v1738
          %v1740 = vpop.f32.mrb[0].mxu0
          %1741 = vmatprep.mubr.bf16.mxu0 0
          %1742 = vmatmul.mubr.bf16.gmra.mrb[0].mxu0 %v1630
          %v1743 = vpop.f32.mrb[0].mxu0
          %v1744 = vadd.f32 0.0, %v1743
          %v1745 = vpop.f32.mrb[0].mxu0
          %v1746 = vpop.f32.mrb[0].mxu0
          %v1747 = vadd.f32 0.0, %v1746
          %v1748 = vpop.f32.mrb[0].mxu0
          %1749 = vmatprep.mubr.bf16.mxu0 0
          %1750 = vmatmul.mubr.bf16.gmra.mrb[0].mxu0 %v1631
          %v1751 = vpop.f32.mrb[0].mxu0
          %v1752 = vadd.f32 0.0, %v1751
          %v1753 = vpop.f32.mrb[0].mxu0
          %v1754 = vpop.f32.mrb[0].mxu0
          %v1755 = vadd.f32 0.0, %v1754
          %v1756 = vpop.f32.mrb[0].mxu0
          %1757 = vmatprep.mubr.bf16.mxu0 0
          %1758 = vmatmul.mubr.bf16.gmra.mrb[0].mxu0 %v1632
          %v1759 = vpop.f32.mrb[0].mxu0
          %v1760 = vadd.f32 0.0, %v1759
          %v1761 = vpop.f32.mrb[0].mxu0
          %v1762 = vpop.f32.mrb[0].mxu0
          %v1763 = vadd.f32 0.0, %v1762
          %v1764 = vpop.f32.mrb[0].mxu0
          %1765 = vmatprep.mubr.bf16.mxu0 0
          %1766 = vmatmul.mubr.bf16.gmra.mrb[0].mxu0 %v1633
          %v1767 = vpop.f32.mrb[0].mxu0
          %v1768 = vadd.f32 0.0, %v1767
          %v1769 = vpop.f32.mrb[0].mxu0
          %v1770 = vpop.f32.mrb[0].mxu0
          %v1771 = vadd.f32 0.0, %v1770
          %v1772 = vpop.f32.mrb[0].mxu0
          %1773 = vmatprep.mubr.bf16.mxu0 0
          %1774 = vmatmul.mubr.bf16.gmra.mrb[0].mxu0 %v1634
          %v1775 = vpop.f32.mrb[0].mxu0
          %v1776 = vadd.f32 0.0, %v1775
          %v1777 = vpop.f32.mrb[0].mxu0
          %v1778 = vpop.f32.mrb[0].mxu0
          %v1779 = vadd.f32 0.0, %v1778
          %v1780 = vpop.f32.mrb[0].mxu0
          %1781 = vmatprep.mubr.bf16.mxu0 0
          %1782 = vmatmul.mubr.bf16.gmra.mrb[0].mxu0 %v1635
          %v1783 = vpop.f32.mrb[0].mxu0
          %v1784 = vadd.f32 0.0, %v1783
          %v1785 = vpop.f32.mrb[0].mxu0
          %v1786 = vpop.f32.mrb[0].mxu0
          %v1787 = vadd.f32 0.0, %v1786
          %v1788 = vpop.f32.mrb[0].mxu0
          %1789 = vmatprep.mubr.bf16.mxu0 0
          %1790 = vmatmul.mubr.bf16.gmra.mrb[0].mxu0 %v1636
          %v1791 = vpop.f32.mrb[0].mxu0
          %v1792 = vadd.f32 0.0, %v1791
          %v1793 = vpop.f32.mrb[0].mxu0
          %v1794 = vpop.f32.mrb[0].mxu0
          %v1795 = vadd.f32 0.0, %v1794
          %v1796 = vpop.f32.mrb[0].mxu0
          %1797 = vdwg.mxu0
          %1798 = vst [vmem:[%s300] sm:$0xff] %v1736
          %1799 = vst [vmem:[%s300 + $0x8] sm:$0xff] %v1739
          %1800 = vst [vmem:[%s300 + $0x10] sm:$0xff] %v1744
          %1801 = vst [vmem:[%s300 + $0x18] sm:$0xff] %v1747
          %1802 = vst [vmem:[%s300 + $0x20] sm:$0xff] %v1752
          %1803 = vst [vmem:[%s300 + $0x28] sm:$0xff] %v1755
          %1804 = vst [vmem:[%s300 + $0x30] sm:$0xff] %v1760
          %1805 = vst [vmem:[%s300 + $0x38] sm:$0xff] %v1763
          %1806 = vst [vmem:[%s300 + $0x40] sm:$0xff] %v1768
          %1807 = vst [vmem:[%s300 + $0x48] sm:$0xff] %v1771
          %1808 = vst [vmem:[%s300 + $0x50] sm:$0xff] %v1776
          %1809 = vst [vmem:[%s300 + $0x58] sm:$0xff] %v1779
          %1810 = vst [vmem:[%s300 + $0x60] sm:$0xff] %v1784
          %1811 = vst [vmem:[%s300 + $0x68] sm:$0xff] %v1787
          %1812 = vst [vmem:[%s300 + $0x70] sm:$0xff] %v1792
          %1813 = vst [vmem:[%s300 + $0x78] sm:$0xff] %v1795
        $region64: #{tpu_custom_call.1} parent=39 // pred_fallthru
          _
        %s1814 = sand.u32 %s154, 1
        %s1815 = scalar_lea.sflag [#allocation8], %s1814
        %s1816 = sand.u32 %s154, 1
        %s1817 = smul.addr %s1816, 128
        %s1818 = scalar_lea.vmem [#allocation13], %s1817
        // Predicated region
        $region65: #{tpu_custom_call.1} parent=39 // pred_check
          %p1819 = pneg %p164
        $region66: #{tpu_custom_call.1} parent=39 // pred_check_branch
          %1821 = sbr.rel (%p1819) target = $region68
        $region67: #{tpu_custom_call.1} parent=39 // pred_region
          %s1822 = smul.u32 16, %s26
          %s1824 = ssub.s32 2048, 2048
          %1825 = vsyncadd %s1815, %s1824
          %s1826 = smul.addr %s1822, 128
          %s1827 = scalar_lea.hbm %s5, %s1826
          %s1828 = sshll.u32 %s1818, 4
          %s1829 = int_to_ptr.vmem [resolvable:$true] %s1828
          %1834 = dma.vmem_to_hbm [thread:$0]  %s1829, 2048, %s1827, %s1815, 128, 128, 8
        $region68: #{tpu_custom_call.1} parent=39 // pred_fallthru
          _
      $region40: #{tpu_custom_call.1} parent=5 // pred_fallthru
        _
      %p1835 = scmp.le.s32.totalorder 2, %s17
      // Predicated region
      $region69: #{tpu_custom_call.1} parent=5 // pred_check
        %p1836 = pneg %p1835
      $region70: #{tpu_custom_call.1} parent=5 // pred_check_branch
        %1838 = sbr.rel (%p1836) target = $region72
      $region71: #{tpu_custom_call.1} parent=5 // pred_region
        %s1839 = ssub.s32 %s17, 2
        // Predicated region
        $region73: #{tpu_custom_call.1} parent=71 // pred_check
          %p1840 = pneg %p170
        $region74: #{tpu_custom_call.1} parent=71 // pred_check_branch
          %1842 = sbr.rel (%p1840) target = $region76
        $region75: #{tpu_custom_call.1} parent=71 // pred_region
          %s1843 = sand.u32 %s155, 1
          %s1844 = scalar_lea.sflag [#allocation8], %s1843
          %s1845 = sand.u32 %s155, 1
          %s1846 = smul.addr %s1845, 128
          %s1847 = scalar_lea.vmem [#allocation13], %s1846
          %1848 = dma.done %s1844, 2048
        $region76: #{tpu_custom_call.1} parent=71 // pred_fallthru
          _
      $region72: #{tpu_custom_call.1} parent=5 // pred_fallthru
        _
    $region6: #{tpu_custom_call.1} parent=1 // loop_footer
      %s21 = sadd.s32 1, %s17
    $region7: #{tpu_custom_call.1} parent=1 // loop_footer_branch
      %16 = sbr.rel target = $region3
    $region8: #{tpu_custom_call.1} parent=1 // loop_exit
      _
    %1849 = vsyncpa [#allocation7], 1
    %s1850 = scalar_lea.sflag [#allocation7], 1
    %1851 = vsyncpa %s1850, 1
    %1852 = vsyncpa [#allocation10], 1
    %1853 = vsyncpa [#allocation8], 1
    %s1854 = scalar_lea.sflag [#allocation8], 1
    %1855 = vsyncpa %s1854, 1

</llo_original>
